<compile_context>
chip_gen: v7x
topology: tpu7x:2x2x1
jax: 0.10.0
libtpu: 0.0.40
codegen_flags: <defaults>
</compile_context>

<pallas_src>
import functools
import math

import jax
import jax.numpy as jnp
from jax.experimental import pallas as pl
from jax.experimental.pallas import tpu as pltpu

LN_EPS = 1e-5  # PyTorch nn.LayerNorm default


def _layernorm(z, w, b):
    mu = jnp.mean(z, axis=-1, keepdims=True)
    var = jnp.mean(jnp.square(z - mu), axis=-1, keepdims=True)
    return (z - mu) * jax.lax.rsqrt(var + LN_EPS) * w + b


# ------------- fused embeddings-LN + encoder stack + pooled head -------------
def pocket_stack_kernel(nhead, tgt_ref, emb_ref, kpad_ref,
                        emb_ln_w_ref, emb_ln_b_ref,
                        in_wT_ref, in_b_ref, out_wT_ref, out_b_ref,
                        ln1_w_ref, ln1_b_ref,
                        l1_wT_ref, l1_b_ref, l2_wT_ref, l2_b_ref,
                        ln2_w_ref, ln2_b_ref,
                        enc_ln_w_ref, enc_ln_b_ref, lm_wT_ref,
                        logits_ref, h_sc, mask_sc):
    b = pl.program_id(0)
    l = pl.program_id(1)
    n_layers = pl.num_programs(1)

    Bt, S, D = h_sc.shape
    H = nhead
    hd = D // H
    scale = 1.0 / math.sqrt(hd)

    # Layer 0: fuse the embedding LayerNorm into the first step and build the
    # additive attention mask ONCE per batch block (causal -inf above diag +
    # PyTorch float key_padding_mask semantics: +1.0 at pad keys).
    @pl.when(l == 0)
    def _():
        e = emb_ref[...].reshape(Bt * S, D)
        h_sc[...] = _layernorm(e, emb_ln_w_ref[...],
                               emb_ln_b_ref[...]).reshape(Bt, S, D)
        rows = jax.lax.broadcasted_iota(jnp.int32, (S, S), 0)
        cols = jax.lax.broadcasted_iota(jnp.int32, (S, S), 1)
        causal = jnp.where(cols > rows, -jnp.inf, 0.0).astype(jnp.float32)
        mask_sc[...] = causal[None, :, :] + kpad_ref[...]            # (Bt,S,S)

    x = h_sc[...].reshape(Bt * S, D)        # resident activation, f32
    mask = mask_sc[...]                     # (Bt, S, S) f32

    # --- self attention (post-norm, batch_first; PyTorch defaults) ---
    # QKV projection on the flattened (Bt*S, D) activation: one MXU matmul,
    # layer selected by dynamic index into the VMEM-resident weight stack.
    qkv = jnp.dot(x.astype(jnp.bfloat16), in_wT_ref[l],
                  preferred_element_type=jnp.float32) + in_b_ref[l]  # (Bt*S,3D)

    ctx_rows = []
    for r in range(Bt):   # static unroll; attention math is per-sequence
        # Head split via one reshape + one lane-aware transpose:
        # (S, 3D) -> (S, 3H, hd) -> (3H, S, hd); q/k/v are leading-dim slices.
        qkv_r = pltpu.einshape(
            "shd->hsd",
            qkv[r * S:(r + 1) * S].reshape(S, 3 * H, hd)).astype(jnp.bfloat16)
        qh, kh, vh = qkv_r[:H], qkv_r[H:2 * H], qkv_r[2 * H:]         # (H,S,hd)

        sc = jnp.einsum('hqd,hkd->hqk', qh, kh,
                        preferred_element_type=jnp.float32) * scale
        sc = sc + mask[r][None, :, :]
        sc = sc - jnp.max(sc, axis=-1, keepdims=True)
        p = jnp.exp(sc)
        p = p / jnp.sum(p, axis=-1, keepdims=True)   # exact divide (parity)
        ctx = jnp.einsum('hqk,hkd->hqd', p.astype(jnp.bfloat16), vh,
                         preferred_element_type=jnp.float32)          # (H,S,hd)
        ctx_rows.append(pltpu.einshape("hsd->shd", ctx).reshape(S, D))
    attn = ctx_rows[0] if Bt == 1 else jnp.concatenate(ctx_rows, axis=0)

    attn_proj = jnp.dot(attn.astype(jnp.bfloat16), out_wT_ref[l],
                        preferred_element_type=jnp.float32) + out_b_ref[l]
    x1 = _layernorm(x + attn_proj, ln1_w_ref[l], ln1_b_ref[l])

    # --- feed-forward (ReLU) ---
    ffh = jnp.maximum(
        jnp.dot(x1.astype(jnp.bfloat16), l1_wT_ref[l],
                preferred_element_type=jnp.float32) + l1_b_ref[l], 0.0)
    ff = jnp.dot(ffh.astype(jnp.bfloat16), l2_wT_ref[l],
                 preferred_element_type=jnp.float32) + l2_b_ref[l]
    x2 = _layernorm(x1 + ff, ln2_w_ref[l], ln2_b_ref[l])              # (Bt*S,D)

    h_sc[...] = x2.reshape(Bt, S, D)

    # Last layer: fuse pooling + final LayerNorm + LM head and emit logits
    # directly (no [B,S,D] HBM writeback, no second pallas_call launch).
    @pl.when(l == n_layers - 1)
    def _():
        x3 = x2.reshape(Bt, S, D)
        seq_iota = jax.lax.broadcasted_iota(jnp.int32, (S, 1), 0)
        pooled_rows = []
        for r in range(Bt):
            idx = tgt_ref[b * Bt + r]                      # scalar-prefetched
            sel = (seq_iota == idx).astype(jnp.float32)    # one-hot row select
            pooled_rows.append(jnp.sum(x3[r] * sel, axis=0, keepdims=True))
        pooled = (pooled_rows[0] if Bt == 1
                  else jnp.concatenate(pooled_rows, axis=0))           # (Bt,D)
        pooled = _layernorm(pooled, enc_ln_w_ref[...], enc_ln_b_ref[...])
        logits = jnp.dot(pooled.astype(jnp.bfloat16), lm_wT_ref[...],
                         preferred_element_type=jnp.float32)           # (Bt,Vp)
        logits_ref[...] = logits.reshape(Bt, 1, -1)


def _default_block_b(B):
    """Largest divisor of B that keeps >= 2 batch blocks (v7x dual TC)."""
    if B <= 1:
        return max(B, 1)
    for cand in range(B // 2, 0, -1):
        if B % cand == 0:
            return cand
    return 1


def encoder_stack_pooled(emb, key_pad, target_indices, params, nhead,
                         block_b=None):
    B, S, D = emb.shape
    nl = params['in_wT'].shape[0]
    V = params['lm_wT'].shape[1]
    if block_b is None:
        block_b = _default_block_b(B)
    assert B % block_b == 0
    n_bblocks = B // block_b

    # Lane-dense logits store: pad the head to a multiple of 128 output lanes
    # (avoids masked partial stores); extra columns are sliced off outside.
    V_pad = max(128, ((V + 127) // 128) * 128)
    lm_wT = params['lm_wT']
    if V_pad != V:
        lm_wT = jnp.pad(lm_wT, ((0, 0), (0, V_pad - V)))

    def full_spec(arr):
        # Full-array block, constant index_map -> fetched once, VMEM-resident.
        return pl.BlockSpec(arr.shape, lambda b, l, tgt: (0,) * arr.ndim)

    kernel = functools.partial(pocket_stack_kernel, nhead)
    out = pl.pallas_call(
        kernel,
        grid_spec=pltpu.PrefetchScalarGridSpec(
            num_scalar_prefetch=1,
            grid=(n_bblocks, nl),
            in_specs=[
                pl.BlockSpec((block_b, S, D), lambda b, l, tgt: (b, 0, 0)),
                pl.BlockSpec((block_b, 1, S), lambda b, l, tgt: (b, 0, 0)),
                full_spec(params['emb_ln_w']), full_spec(params['emb_ln_b']),
                full_spec(params['in_wT']), full_spec(params['in_b']),
                full_spec(params['out_wT']), full_spec(params['out_b']),
                full_spec(params['ln1_w']), full_spec(params['ln1_b']),
                full_spec(params['l1_wT']), full_spec(params['l1_b']),
                full_spec(params['l2_wT']), full_spec(params['l2_b']),
                full_spec(params['ln2_w']), full_spec(params['ln2_b']),
                full_spec(params['enc_ln_w']), full_spec(params['enc_ln_b']),
                full_spec(lm_wT),
            ],
            out_specs=pl.BlockSpec((block_b, 1, V_pad),
                                   lambda b, l, tgt: (b, 0, 0)),
            scratch_shapes=[
                pltpu.VMEM((block_b, S, D), jnp.float32),   # resident hidden
                pltpu.VMEM((block_b, S, S), jnp.float32),   # additive mask
            ],
        ),
        out_shape=jax.ShapeDtypeStruct((B, 1, V_pad), jnp.float32),
        compiler_params=pltpu.CompilerParams(
            dimension_semantics=("parallel", "arbitrary"),
            vmem_limit_bytes=32 * 1024 * 1024),
    )(target_indices, emb, key_pad,
      params['emb_ln_w'], params['emb_ln_b'],
      params['in_wT'], params['in_b'], params['out_wT'], params['out_b'],
      params['ln1_w'], params['ln1_b'],
      params['l1_wT'], params['l1_b'], params['l2_wT'], params['l2_b'],
      params['ln2_w'], params['ln2_b'],
      params['enc_ln_w'], params['enc_ln_b'], lm_wT)
    return out[:, 0, :V]


# ------------------------------- full forward --------------------------------
def pocket_forward(params, input_ids, cfg, block_b=None):
    B, S = input_ids.shape
    pad_id, mask_id = cfg['pad_id'], cfg['mask_id']

    # Embedding gathers stay in plain JAX (glue); the embedding LayerNorm is
    # fused into the encoder kernel's first grid step.
    token_mask = (input_ids != pad_id).astype(jnp.int32)
    position_ids = jnp.cumsum(token_mask, axis=1) * token_mask
    inputs_embeds = jnp.take(params['wte'], input_ids, axis=0)
    position_embeds = jnp.take(params['wpe'], position_ids, axis=0)
    emb = (inputs_embeds + position_embeds).astype(jnp.float32)
    # dropout == identity (eval)

    key_pad = (input_ids == pad_id).astype(jnp.float32).reshape(B, 1, S)
    # Rows with no mask token pool position 0 (same as torch argmax semantics).
    target_indices = jnp.argmax((input_ids == mask_id).astype(jnp.int32),
                                axis=-1).astype(jnp.int32)

    return encoder_stack_pooled(emb, key_pad, target_indices, params,
                                cfg['nhead'], block_b)


# --------------------------------- params ------------------------------------
def init_params(key, cfg):
    D, V = cfg['d_model'], cfg['vocab_size']
    P, Hid, nl = cfg['n_positions'], cfg['d_hid'], cfg['nlayers']
    keys = iter(jax.random.split(key, 3 + 4 * nl))
    nrm = lambda k, shp: jax.random.normal(k, shp, jnp.float32) * 0.02

    wte = nrm(next(keys), (V, D)).at[cfg['pad_id']].set(0.0)
    wpe = nrm(next(keys), (P, D)).at[cfg['pad_id']].set(0.0)

    # PyTorch stores Linear weights as [out, in]; transpose ONCE here to
    # [in, out] (matmul weights kept in bf16), stacked on a layer axis so the
    # fused kernel can keep the whole stack VMEM-resident.
    in_wT, out_wT, l1_wT, l2_wT = [], [], [], []
    for _ in range(nl):
        in_wT.append(nrm(next(keys), (3 * D, D)).T)    # [D, 3D]
        out_wT.append(nrm(next(keys), (D, D)).T)       # [D, D]
        l1_wT.append(nrm(next(keys), (Hid, D)).T)      # [D, Hid]
        l2_wT.append(nrm(next(keys), (D, Hid)).T)      # [Hid, D]

    params = {
        'wte': wte, 'wpe': wpe,
        'emb_ln_w': jnp.ones((1, D), jnp.float32),
        'emb_ln_b': jnp.zeros((1, D), jnp.float32),
        'enc_ln_w': jnp.ones((1, D), jnp.float32),
        'enc_ln_b': jnp.zeros((1, D), jnp.float32),
        'lm_wT': nrm(next(keys), (V, D)).T.astype(jnp.bfloat16),       # [D, V]
        'in_wT': jnp.stack(in_wT).astype(jnp.bfloat16),                # [nl,D,3D]
        'in_b': jnp.zeros((nl, 1, 3 * D), jnp.float32),
        'out_wT': jnp.stack(out_wT).astype(jnp.bfloat16),              # [nl,D,D]
        'out_b': jnp.zeros((nl, 1, D), jnp.float32),
        'ln1_w': jnp.ones((nl, 1, D), jnp.float32),
        'ln1_b': jnp.zeros((nl, 1, D), jnp.float32),
        'l1_wT': jnp.stack(l1_wT).astype(jnp.bfloat16),                # [nl,D,Hid]
        'l1_b': jnp.zeros((nl, 1, Hid), jnp.float32),
        'l2_wT': jnp.stack(l2_wT).astype(jnp.bfloat16),                # [nl,Hid,D]
        'l2_b': jnp.zeros((nl, 1, D), jnp.float32),
        'ln2_w': jnp.ones((nl, 1, D), jnp.float32),
        'ln2_b': jnp.zeros((nl, 1, D), jnp.float32),
    }
    return params


if __name__ == "__main__":
    cfg = dict(d_model=32, nhead=4, d_hid=64, nlayers=2, vocab_size=32,
               n_positions=64, pad_id=0, mask_id=1)
    key = jax.random.PRNGKey(0)
    pkey, ikey = jax.random.split(key)
    params = init_params(pkey, cfg)

    B, S = 2, 8
    input_ids = jax.random.randint(ikey, (B, S), 2, cfg['vocab_size'], dtype=jnp.int32)
    input_ids = input_ids.at[:, -2:].set(cfg['pad_id'])   # trailing pad tokens
    input_ids = input_ids.at[0, 3].set(cfg['mask_id'])    # mask token to pool at
    input_ids = input_ids.at[1, 5].set(cfg['mask_id'])

    out = pocket_forward(params, input_ids, cfg)
    jax.block_until_ready(out)
    assert out.shape == (B, cfg['vocab_size'])
    assert bool(jnp.all(jnp.isfinite(out)))
    print("KERNEL_OK")
</pallas_src>

<mosaic_0001>
module attributes {stable_mosaic.version = 11 : i64} {
  func.func @pocket_stack_kernel(%arg0: i32, %arg1: i32, %arg2: memref<2xi32, #tpu.memory_space<smem>>, %arg3: memref<1x8x32xf32, #tpu.memory_space<vmem>>, %arg4: memref<1x1x8xf32, #tpu.memory_space<vmem>>, %arg5: memref<1x32xf32, #tpu.memory_space<vmem>>, %arg6: memref<1x32xf32, #tpu.memory_space<vmem>>, %arg7: memref<2x32x96xbf16, #tpu.memory_space<vmem>>, %arg8: memref<2x1x96xf32, #tpu.memory_space<vmem>>, %arg9: memref<2x32x32xbf16, #tpu.memory_space<vmem>>, %arg10: memref<2x1x32xf32, #tpu.memory_space<vmem>>, %arg11: memref<2x1x32xf32, #tpu.memory_space<vmem>>, %arg12: memref<2x1x32xf32, #tpu.memory_space<vmem>>, %arg13: memref<2x32x64xbf16, #tpu.memory_space<vmem>>, %arg14: memref<2x1x64xf32, #tpu.memory_space<vmem>>, %arg15: memref<2x64x32xbf16, #tpu.memory_space<vmem>>, %arg16: memref<2x1x32xf32, #tpu.memory_space<vmem>>, %arg17: memref<2x1x32xf32, #tpu.memory_space<vmem>>, %arg18: memref<2x1x32xf32, #tpu.memory_space<vmem>>, %arg19: memref<1x32xf32, #tpu.memory_space<vmem>>, %arg20: memref<1x32xf32, #tpu.memory_space<vmem>>, %arg21: memref<32x128xbf16, #tpu.memory_space<vmem>>, %arg22: memref<1x1x128xf32, #tpu.memory_space<vmem>>, %arg23: memref<1x8x32xf32, #tpu.memory_space<vmem>>, %arg24: memref<1x8x8xf32, #tpu.memory_space<vmem>>) attributes {dimension_semantics = [#tpu.dimension_semantics<parallel>, #tpu.dimension_semantics<arbitrary>], iteration_bounds = array<i64: 2, 2>, scalar_prefetch = 1 : i64, scratch_operands = 2 : i64, tpu.core_type = #tpu.core_type<tc>, window_params = [{transform_indices = @transform_0, window_bounds = array<i64: 1, 8, 32>}, {transform_indices = @transform_1, window_bounds = array<i64: 1, 1, 8>}, {pipeline_mode = #tpu.pipeline_mode<synchronous>, transform_indices = @transform_2, window_bounds = array<i64: 1, 32>}, {pipeline_mode = #tpu.pipeline_mode<synchronous>, transform_indices = @transform_3, window_bounds = array<i64: 1, 32>}, {pipeline_mode = #tpu.pipeline_mode<synchronous>, transform_indices = @transform_4, window_bounds = array<i64: 2, 32, 96>}, {pipeline_mode = #tpu.pipeline_mode<synchronous>, transform_indices = @transform_5, window_bounds = array<i64: 2, 1, 96>}, {pipeline_mode = #tpu.pipeline_mode<synchronous>, transform_indices = @transform_6, window_bounds = array<i64: 2, 32, 32>}, {pipeline_mode = #tpu.pipeline_mode<synchronous>, transform_indices = @transform_7, window_bounds = array<i64: 2, 1, 32>}, {pipeline_mode = #tpu.pipeline_mode<synchronous>, transform_indices = @transform_8, window_bounds = array<i64: 2, 1, 32>}, {pipeline_mode = #tpu.pipeline_mode<synchronous>, transform_indices = @transform_9, window_bounds = array<i64: 2, 1, 32>}, {pipeline_mode = #tpu.pipeline_mode<synchronous>, transform_indices = @transform_10, window_bounds = array<i64: 2, 32, 64>}, {pipeline_mode = #tpu.pipeline_mode<synchronous>, transform_indices = @transform_11, window_bounds = array<i64: 2, 1, 64>}, {pipeline_mode = #tpu.pipeline_mode<synchronous>, transform_indices = @transform_12, window_bounds = array<i64: 2, 64, 32>}, {pipeline_mode = #tpu.pipeline_mode<synchronous>, transform_indices = @transform_13, window_bounds = array<i64: 2, 1, 32>}, {pipeline_mode = #tpu.pipeline_mode<synchronous>, transform_indices = @transform_14, window_bounds = array<i64: 2, 1, 32>}, {pipeline_mode = #tpu.pipeline_mode<synchronous>, transform_indices = @transform_15, window_bounds = array<i64: 2, 1, 32>}, {pipeline_mode = #tpu.pipeline_mode<synchronous>, transform_indices = @transform_16, window_bounds = array<i64: 1, 32>}, {pipeline_mode = #tpu.pipeline_mode<synchronous>, transform_indices = @transform_17, window_bounds = array<i64: 1, 32>}, {pipeline_mode = #tpu.pipeline_mode<synchronous>, transform_indices = @transform_18, window_bounds = array<i64: 32, 128>}, {transform_indices = @transform_19, window_bounds = array<i64: 1, 1, 128>}]} {
    %c0_i32 = arith.constant 0 : i32
    %0 = arith.cmpi eq, %arg1, %c0_i32 : i32
    %1 = arith.extui %0 : i1 to i32
    %c0_i32_0 = arith.constant 0 : i32
    %2 = arith.cmpi ne, %1, %c0_i32_0 : i32
    scf.if %2 {
      %c0_53 = arith.constant 0 : index
      %c0_54 = arith.constant 0 : index
      %c0_55 = arith.constant 0 : index
      %137 = vector.load %arg3[%c0_53, %c0_54, %c0_55] : memref<1x8x32xf32, #tpu.memory_space<vmem>>, vector<1x8x32xf32>
      %138 = vector.shape_cast %137 : vector<1x8x32xf32> to vector<8x32xf32>
      %c0_56 = arith.constant 0 : index
      %c0_57 = arith.constant 0 : index
      %139 = vector.load %arg5[%c0_56, %c0_57] : memref<1x32xf32, #tpu.memory_space<vmem>>, vector<1x32xf32>
      %c0_58 = arith.constant 0 : index
      %c0_59 = arith.constant 0 : index
      %140 = vector.load %arg6[%c0_58, %c0_59] : memref<1x32xf32, #tpu.memory_space<vmem>>, vector<1x32xf32>
      %cst_60 = arith.constant dense<0.000000e+00> : vector<8xf32>
      %141 = vector.multi_reduction <add>, %138, %cst_60 [1] : vector<8x32xf32> to vector<8xf32>
      %142 = vector.shape_cast %141 : vector<8xf32> to vector<8x1xf32>
      %cst_61 = arith.constant 3.200000e+01 : f32
      %143 = vector.broadcast %cst_61 : f32 to vector<8x1xf32>
      %144 = arith.divf %142, %143 : vector<8x1xf32>
      %145 = vector.broadcast %144 : vector<8x1xf32> to vector<8x32xf32>
      %146 = arith.subf %138, %145 : vector<8x32xf32>
      %147 = arith.mulf %146, %146 : vector<8x32xf32>
      %cst_62 = arith.constant dense<0.000000e+00> : vector<8xf32>
      %148 = vector.multi_reduction <add>, %147, %cst_62 [1] : vector<8x32xf32> to vector<8xf32>
      %149 = vector.shape_cast %148 : vector<8xf32> to vector<8x1xf32>
      %cst_63 = arith.constant 3.200000e+01 : f32
      %150 = vector.broadcast %cst_63 : f32 to vector<8x1xf32>
      %151 = arith.divf %149, %150 : vector<8x1xf32>
      %152 = vector.broadcast %144 : vector<8x1xf32> to vector<8x32xf32>
      %153 = arith.subf %138, %152 : vector<8x32xf32>
      %cst_64 = arith.constant 9.99999974E-6 : f32
      %154 = vector.broadcast %cst_64 : f32 to vector<8x1xf32>
      %155 = arith.addf %151, %154 : vector<8x1xf32>
      %156 = math.rsqrt %155 : vector<8x1xf32>
      %157 = vector.broadcast %156 : vector<8x1xf32> to vector<8x32xf32>
      %158 = arith.mulf %153, %157 : vector<8x32xf32>
      %159 = vector.broadcast %139 : vector<1x32xf32> to vector<8x32xf32>
      %160 = arith.mulf %158, %159 : vector<8x32xf32>
      %161 = vector.broadcast %140 : vector<1x32xf32> to vector<8x32xf32>
      %162 = arith.addf %160, %161 : vector<8x32xf32>
      %163 = vector.shape_cast %162 : vector<8x32xf32> to vector<1x8x32xf32>
      %c0_65 = arith.constant 0 : index
      %c0_66 = arith.constant 0 : index
      %c0_67 = arith.constant 0 : index
      %164 = vector.load %arg23[%c0_65, %c0_66, %c0_67] : memref<1x8x32xf32, #tpu.memory_space<vmem>>, vector<1x8x32xf32>
      tpu.vector_store %arg23[%c0_65, %c0_66, %c0_67], %163 {strides = array<i32>} : memref<1x8x32xf32, #tpu.memory_space<vmem>>, vector<1x8x32xf32>,
      %165 = tpu.iota {dimensions = array<i32: 0>} : vector<8x8xi32>
      %166 = tpu.iota {dimensions = array<i32: 1>} : vector<8x8xi32>
      %167 = arith.cmpi sgt, %166, %165 : vector<8x8xi32>
      %cst_68 = arith.constant 0xFF800000 : f32
      %cst_69 = arith.constant 0.000000e+00 : f32
      %168 = vector.broadcast %cst_68 : f32 to vector<8x8xf32>
      %169 = vector.broadcast %cst_69 : f32 to vector<8x8xf32>
      %170 = arith.select %167, %168, %169 : vector<8x8xi1>, vector<8x8xf32>
      %171 = vector.shape_cast %170 : vector<8x8xf32> to vector<1x8x8xf32>
      %c0_70 = arith.constant 0 : index
      %c0_71 = arith.constant 0 : index
      %c0_72 = arith.constant 0 : index
      %172 = vector.load %arg4[%c0_70, %c0_71, %c0_72] : memref<1x1x8xf32, #tpu.memory_space<vmem>>, vector<1x1x8xf32>
      %173 = vector.broadcast %172 : vector<1x1x8xf32> to vector<1x8x8xf32>
      %174 = arith.addf %171, %173 : vector<1x8x8xf32>
      %c0_73 = arith.constant 0 : index
      %c0_74 = arith.constant 0 : index
      %c0_75 = arith.constant 0 : index
      %175 = vector.load %arg24[%c0_73, %c0_74, %c0_75] : memref<1x8x8xf32, #tpu.memory_space<vmem>>, vector<1x8x8xf32>
      tpu.vector_store %arg24[%c0_73, %c0_74, %c0_75], %174 {strides = array<i32>} : memref<1x8x8xf32, #tpu.memory_space<vmem>>, vector<1x8x8xf32>,
    } else {
    }
    %c0 = arith.constant 0 : index
    %c0_1 = arith.constant 0 : index
    %c0_2 = arith.constant 0 : index
    %3 = vector.load %arg23[%c0, %c0_1, %c0_2] : memref<1x8x32xf32, #tpu.memory_space<vmem>>, vector<1x8x32xf32>
    %4 = vector.shape_cast %3 : vector<1x8x32xf32> to vector<8x32xf32>
    %c0_3 = arith.constant 0 : index
    %c0_4 = arith.constant 0 : index
    %c0_5 = arith.constant 0 : index
    %5 = vector.load %arg24[%c0_3, %c0_4, %c0_5] : memref<1x8x8xf32, #tpu.memory_space<vmem>>, vector<1x8x8xf32>
    %6 = arith.truncf %4 : vector<8x32xf32> to vector<8x32xbf16>
    %7 = arith.index_cast %arg1 : i32 to index
    %c0_6 = arith.constant 0 : index
    %c0_7 = arith.constant 0 : index
    %8 = vector.load %arg7[%7, %c0_6, %c0_7] : memref<2x32x96xbf16, #tpu.memory_space<vmem>>, vector<1x32x96xbf16>
    %9 = vector.shape_cast %8 : vector<1x32x96xbf16> to vector<32x96xbf16>
    %cst = arith.constant dense<0.000000e+00> : vector<8x96xf32>
    %10 = tpu.matmul %6, %9, %cst {dimension_numbers = #tpu.dot_dimension_numbers<[1], [0], [0], [1], [0, 0, 1, 1], [], []>} : vector<8x32xbf16>, vector<32x96xbf16>, vector<8x96xf32> -> vector<8x96xf32>
    %11 = arith.index_cast %arg1 : i32 to index
    %c0_8 = arith.constant 0 : index
    %c0_9 = arith.constant 0 : index
    %12 = vector.load %arg8[%11, %c0_8, %c0_9] : memref<2x1x96xf32, #tpu.memory_space<vmem>>, vector<1x1x96xf32>
    %13 = vector.shape_cast %12 : vector<1x1x96xf32> to vector<1x96xf32>
    %14 = vector.broadcast %13 : vector<1x96xf32> to vector<8x96xf32>
    %15 = arith.addf %10, %14 : vector<8x96xf32>
    %16 = vector.shape_cast %15 : vector<8x96xf32> to vector<8x12x8xf32>
    %17 = tpu.transpose %16, [1, 0, 2] : vector<8x12x8xf32> -> vector<12x8x8xf32>
    %18 = arith.truncf %17 : vector<12x8x8xf32> to vector<12x8x8xbf16>
    %19 = vector.extract_strided_slice %18 {offsets = [0, 0, 0], sizes = [4, 8, 8], strides = [1, 1, 1]} : vector<12x8x8xbf16> to vector<4x8x8xbf16>
    %20 = vector.extract_strided_slice %18 {offsets = [4, 0, 0], sizes = [4, 8, 8], strides = [1, 1, 1]} : vector<12x8x8xbf16> to vector<4x8x8xbf16>
    %21 = vector.extract_strided_slice %18 {offsets = [8, 0, 0], sizes = [4, 8, 8], strides = [1, 1, 1]} : vector<12x8x8xbf16> to vector<4x8x8xbf16>
    "tpu.trace_start"() <{level = 10 : i32, message = "hqd,hkd->hqk"}> : () -> ()
    %cst_10 = arith.constant dense<0.000000e+00> : vector<4x8x8xf32>
    %22 = tpu.matmul %19, %20, %cst_10 {dimension_numbers = #tpu.dot_dimension_numbers<[2], [2], [1], [1], [0, 0, 0, 1, 1, 1], [0], [0]>} : vector<4x8x8xbf16>, vector<4x8x8xbf16>, vector<4x8x8xf32> -> vector<4x8x8xf32>
    "tpu.trace_stop"() : () -> ()
    %cst_11 = arith.constant 0.353553385 : f32
    %23 = vector.broadcast %cst_11 : f32 to vector<4x8x8xf32>
    %24 = arith.mulf %22, %23 : vector<4x8x8xf32>
    %25 = vector.shape_cast %5 : vector<1x8x8xf32> to vector<8x8xf32>
    %26 = vector.shape_cast %25 : vector<8x8xf32> to vector<1x8x8xf32>
    %27 = vector.broadcast %26 : vector<1x8x8xf32> to vector<4x8x8xf32>
    %28 = arith.addf %24, %27 : vector<4x8x8xf32>
    %cst_12 = arith.constant dense<0xFF800000> : vector<4x8xf32>
    %29 = vector.multi_reduction <maximumf>, %28, %cst_12 [2] : vector<4x8x8xf32> to vector<4x8xf32>
    %30 = vector.shape_cast %29 : vector<4x8xf32> to vector<4x8x1xf32>
    %31 = vector.broadcast %30 : vector<4x8x1xf32> to vector<4x8x8xf32>
    %32 = arith.subf %28, %31 : vector<4x8x8xf32>
    %33 = math.exp %32 : vector<4x8x8xf32>
    %cst_13 = arith.constant dense<0.000000e+00> : vector<4x8xf32>
    %34 = vector.multi_reduction <add>, %33, %cst_13 [2] : vector<4x8x8xf32> to vector<4x8xf32>
    %35 = vector.shape_cast %34 : vector<4x8xf32> to vector<4x8x1xf32>
    %36 = vector.broadcast %35 : vector<4x8x1xf32> to vector<4x8x8xf32>
    %37 = arith.divf %33, %36 : vector<4x8x8xf32>
    %38 = arith.truncf %37 : vector<4x8x8xf32> to vector<4x8x8xbf16>
    "tpu.trace_start"() <{level = 10 : i32, message = "hqk,hkd->hqd"}> : () -> ()
    %cst_14 = arith.constant dense<0.000000e+00> : vector<4x8x8xf32>
    %39 = tpu.matmul %38, %21, %cst_14 {dimension_numbers = #tpu.dot_dimension_numbers<[2], [1], [1], [2], [0, 0, 0, 1, 1, 2], [0], [0]>} : vector<4x8x8xbf16>, vector<4x8x8xbf16>, vector<4x8x8xf32> -> vector<4x8x8xf32>
    "tpu.trace_stop"() : () -> ()
    %40 = tpu.transpose %39, [1, 0, 2] : vector<4x8x8xf32> -> vector<8x4x8xf32>
    %41 = vector.shape_cast %40 : vector<8x4x8xf32> to vector<8x32xf32>
    %42 = arith.truncf %41 : vector<8x32xf32> to vector<8x32xbf16>
    %43 = arith.index_cast %arg1 : i32 to index
    %c0_15 = arith.constant 0 : index
    %c0_16 = arith.constant 0 : index
    %44 = vector.load %arg9[%43, %c0_15, %c0_16] : memref<2x32x32xbf16, #tpu.memory_space<vmem>>, vector<1x32x32xbf16>
    %45 = vector.shape_cast %44 : vector<1x32x32xbf16> to vector<32x32xbf16>
    %cst_17 = arith.constant dense<0.000000e+00> : vector<8x32xf32>
    %46 = tpu.matmul %42, %45, %cst_17 {dimension_numbers = #tpu.dot_dimension_numbers<[1], [0], [0], [1], [0, 0, 1, 1], [], []>} : vector<8x32xbf16>, vector<32x32xbf16>, vector<8x32xf32> -> vector<8x32xf32>
    %47 = arith.index_cast %arg1 : i32 to index
    %c0_18 = arith.constant 0 : index
    %c0_19 = arith.constant 0 : index
    %48 = vector.load %arg10[%47, %c0_18, %c0_19] : memref<2x1x32xf32, #tpu.memory_space<vmem>>, vector<1x1x32xf32>
    %49 = vector.shape_cast %48 : vector<1x1x32xf32> to vector<1x32xf32>
    %50 = vector.broadcast %49 : vector<1x32xf32> to vector<8x32xf32>
    %51 = arith.addf %46, %50 : vector<8x32xf32>
    %52 = arith.addf %4, %51 : vector<8x32xf32>
    %53 = arith.index_cast %arg1 : i32 to index
    %c0_20 = arith.constant 0 : index
    %c0_21 = arith.constant 0 : index
    %54 = vector.load %arg11[%53, %c0_20, %c0_21] : memref<2x1x32xf32, #tpu.memory_space<vmem>>, vector<1x1x32xf32>
    %55 = vector.shape_cast %54 : vector<1x1x32xf32> to vector<1x32xf32>
    %56 = arith.index_cast %arg1 : i32 to index
    %c0_22 = arith.constant 0 : index
    %c0_23 = arith.constant 0 : index
    %57 = vector.load %arg12[%56, %c0_22, %c0_23] : memref<2x1x32xf32, #tpu.memory_space<vmem>>, vector<1x1x32xf32>
    %58 = vector.shape_cast %57 : vector<1x1x32xf32> to vector<1x32xf32>
    %cst_24 = arith.constant dense<0.000000e+00> : vector<8xf32>
    %59 = vector.multi_reduction <add>, %52, %cst_24 [1] : vector<8x32xf32> to vector<8xf32>
    %60 = vector.shape_cast %59 : vector<8xf32> to vector<8x1xf32>
    %cst_25 = arith.constant 3.200000e+01 : f32
    %61 = vector.broadcast %cst_25 : f32 to vector<8x1xf32>
    %62 = arith.divf %60, %61 : vector<8x1xf32>
    %63 = vector.broadcast %62 : vector<8x1xf32> to vector<8x32xf32>
    %64 = arith.subf %52, %63 : vector<8x32xf32>
    %65 = arith.mulf %64, %64 : vector<8x32xf32>
    %cst_26 = arith.constant dense<0.000000e+00> : vector<8xf32>
    %66 = vector.multi_reduction <add>, %65, %cst_26 [1] : vector<8x32xf32> to vector<8xf32>
    %67 = vector.shape_cast %66 : vector<8xf32> to vector<8x1xf32>
    %cst_27 = arith.constant 3.200000e+01 : f32
    %68 = vector.broadcast %cst_27 : f32 to vector<8x1xf32>
    %69 = arith.divf %67, %68 : vector<8x1xf32>
    %70 = vector.broadcast %62 : vector<8x1xf32> to vector<8x32xf32>
    %71 = arith.subf %52, %70 : vector<8x32xf32>
    %cst_28 = arith.constant 9.99999974E-6 : f32
    %72 = vector.broadcast %cst_28 : f32 to vector<8x1xf32>
    %73 = arith.addf %69, %72 : vector<8x1xf32>
    %74 = math.rsqrt %73 : vector<8x1xf32>
    %75 = vector.broadcast %74 : vector<8x1xf32> to vector<8x32xf32>
    %76 = arith.mulf %71, %75 : vector<8x32xf32>
    %77 = vector.broadcast %55 : vector<1x32xf32> to vector<8x32xf32>
    %78 = arith.mulf %76, %77 : vector<8x32xf32>
    %79 = vector.broadcast %58 : vector<1x32xf32> to vector<8x32xf32>
    %80 = arith.addf %78, %79 : vector<8x32xf32>
    %81 = arith.truncf %80 : vector<8x32xf32> to vector<8x32xbf16>
    %82 = arith.index_cast %arg1 : i32 to index
    %c0_29 = arith.constant 0 : index
    %c0_30 = arith.constant 0 : index
    %83 = vector.load %arg13[%82, %c0_29, %c0_30] : memref<2x32x64xbf16, #tpu.memory_space<vmem>>, vector<1x32x64xbf16>
    %84 = vector.shape_cast %83 : vector<1x32x64xbf16> to vector<32x64xbf16>
    %cst_31 = arith.constant dense<0.000000e+00> : vector<8x64xf32>
    %85 = tpu.matmul %81, %84, %cst_31 {dimension_numbers = #tpu.dot_dimension_numbers<[1], [0], [0], [1], [0, 0, 1, 1], [], []>} : vector<8x32xbf16>, vector<32x64xbf16>, vector<8x64xf32> -> vector<8x64xf32>
    %86 = arith.index_cast %arg1 : i32 to index
    %c0_32 = arith.constant 0 : index
    %c0_33 = arith.constant 0 : index
    %87 = vector.load %arg14[%86, %c0_32, %c0_33] : memref<2x1x64xf32, #tpu.memory_space<vmem>>, vector<1x1x64xf32>
    %88 = vector.shape_cast %87 : vector<1x1x64xf32> to vector<1x64xf32>
    %89 = vector.broadcast %88 : vector<1x64xf32> to vector<8x64xf32>
    %90 = arith.addf %85, %89 : vector<8x64xf32>
    %cst_34 = arith.constant 0.000000e+00 : f32
    %91 = vector.broadcast %cst_34 : f32 to vector<8x64xf32>
    %92 = arith.maximumf %90, %91 : vector<8x64xf32>
    %93 = arith.truncf %92 : vector<8x64xf32> to vector<8x64xbf16>
    %94 = arith.index_cast %arg1 : i32 to index
    %c0_35 = arith.constant 0 : index
    %c0_36 = arith.constant 0 : index
    %95 = vector.load %arg15[%94, %c0_35, %c0_36] : memref<2x64x32xbf16, #tpu.memory_space<vmem>>, vector<1x64x32xbf16>
    %96 = vector.shape_cast %95 : vector<1x64x32xbf16> to vector<64x32xbf16>
    %cst_37 = arith.constant dense<0.000000e+00> : vector<8x32xf32>
    %97 = tpu.matmul %93, %96, %cst_37 {dimension_numbers = #tpu.dot_dimension_numbers<[1], [0], [0], [1], [0, 0, 1, 1], [], []>} : vector<8x64xbf16>, vector<64x32xbf16>, vector<8x32xf32> -> vector<8x32xf32>
    %98 = arith.index_cast %arg1 : i32 to index
    %c0_38 = arith.constant 0 : index
    %c0_39 = arith.constant 0 : index
    %99 = vector.load %arg16[%98, %c0_38, %c0_39] : memref<2x1x32xf32, #tpu.memory_space<vmem>>, vector<1x1x32xf32>
    %100 = vector.shape_cast %99 : vector<1x1x32xf32> to vector<1x32xf32>
    %101 = vector.broadcast %100 : vector<1x32xf32> to vector<8x32xf32>
    %102 = arith.addf %97, %101 : vector<8x32xf32>
    %103 = arith.addf %80, %102 : vector<8x32xf32>
    %104 = arith.index_cast %arg1 : i32 to index
    %c0_40 = arith.constant 0 : index
    %c0_41 = arith.constant 0 : index
    %105 = vector.load %arg17[%104, %c0_40, %c0_41] : memref<2x1x32xf32, #tpu.memory_space<vmem>>, vector<1x1x32xf32>
    %106 = vector.shape_cast %105 : vector<1x1x32xf32> to vector<1x32xf32>
    %107 = arith.index_cast %arg1 : i32 to index
    %c0_42 = arith.constant 0 : index
    %c0_43 = arith.constant 0 : index
    %108 = vector.load %arg18[%107, %c0_42, %c0_43] : memref<2x1x32xf32, #tpu.memory_space<vmem>>, vector<1x1x32xf32>
    %109 = vector.shape_cast %108 : vector<1x1x32xf32> to vector<1x32xf32>
    %cst_44 = arith.constant dense<0.000000e+00> : vector<8xf32>
    %110 = vector.multi_reduction <add>, %103, %cst_44 [1] : vector<8x32xf32> to vector<8xf32>
    %111 = vector.shape_cast %110 : vector<8xf32> to vector<8x1xf32>
    %cst_45 = arith.constant 3.200000e+01 : f32
    %112 = vector.broadcast %cst_45 : f32 to vector<8x1xf32>
    %113 = arith.divf %111, %112 : vector<8x1xf32>
    %114 = vector.broadcast %113 : vector<8x1xf32> to vector<8x32xf32>
    %115 = arith.subf %103, %114 : vector<8x32xf32>
    %116 = arith.mulf %115, %115 : vector<8x32xf32>
    %cst_46 = arith.constant dense<0.000000e+00> : vector<8xf32>
    %117 = vector.multi_reduction <add>, %116, %cst_46 [1] : vector<8x32xf32> to vector<8xf32>
    %118 = vector.shape_cast %117 : vector<8xf32> to vector<8x1xf32>
    %cst_47 = arith.constant 3.200000e+01 : f32
    %119 = vector.broadcast %cst_47 : f32 to vector<8x1xf32>
    %120 = arith.divf %118, %119 : vector<8x1xf32>
    %121 = vector.broadcast %113 : vector<8x1xf32> to vector<8x32xf32>
    %122 = arith.subf %103, %121 : vector<8x32xf32>
    %cst_48 = arith.constant 9.99999974E-6 : f32
    %123 = vector.broadcast %cst_48 : f32 to vector<8x1xf32>
    %124 = arith.addf %120, %123 : vector<8x1xf32>
    %125 = math.rsqrt %124 : vector<8x1xf32>
    %126 = vector.broadcast %125 : vector<8x1xf32> to vector<8x32xf32>
    %127 = arith.mulf %122, %126 : vector<8x32xf32>
    %128 = vector.broadcast %106 : vector<1x32xf32> to vector<8x32xf32>
    %129 = arith.mulf %127, %128 : vector<8x32xf32>
    %130 = vector.broadcast %109 : vector<1x32xf32> to vector<8x32xf32>
    %131 = arith.addf %129, %130 : vector<8x32xf32>
    %132 = vector.shape_cast %131 : vector<8x32xf32> to vector<1x8x32xf32>
    %c0_49 = arith.constant 0 : index
    %c0_50 = arith.constant 0 : index
    %c0_51 = arith.constant 0 : index
    %133 = vector.load %arg23[%c0_49, %c0_50, %c0_51] : memref<1x8x32xf32, #tpu.memory_space<vmem>>, vector<1x8x32xf32>
    tpu.vector_store %arg23[%c0_49, %c0_50, %c0_51], %132 {strides = array<i32>} : memref<1x8x32xf32, #tpu.memory_space<vmem>>, vector<1x8x32xf32>,
    %c1_i32 = arith.constant 1 : i32
    %134 = arith.cmpi eq, %arg1, %c1_i32 : i32
    %135 = arith.extui %134 : i1 to i32
    %c0_i32_52 = arith.constant 0 : i32
    %136 = arith.cmpi ne, %135, %c0_i32_52 : i32
    scf.if %136 {
      %137 = vector.shape_cast %131 : vector<8x32xf32> to vector<1x8x32xf32>
      %138 = tpu.iota {dimensions = array<i32: 0>} : vector<8x1xi32>
      %c1_i32_53 = arith.constant 1 : i32
      %139 = arith.muli %arg0, %c1_i32_53 : i32
      %c0_i32_54 = arith.constant 0 : i32
      %140 = arith.addi %139, %c0_i32_54 : i32
      %141 = arith.index_cast %140 : i32 to index
      %142 = memref.load %arg2[%141] : memref<2xi32, #tpu.memory_space<smem>>
      %143 = vector.broadcast %142 : i32 to vector<8x1xi32>
      %144 = arith.cmpi eq, %138, %143 : vector<8x1xi32>
      %145 = arith.extui %144 : vector<8x1xi1> to vector<8x1xi32>
      %146 = arith.sitofp %145 : vector<8x1xi32> to vector<8x1xf32>
      %147 = vector.shape_cast %137 : vector<1x8x32xf32> to vector<8x32xf32>
      %148 = vector.broadcast %146 : vector<8x1xf32> to vector<8x32xf32>
      %149 = arith.mulf %147, %148 : vector<8x32xf32>
      %cst_55 = arith.constant dense<0.000000e+00> : vector<32xf32>
      %150 = vector.multi_reduction <add>, %149, %cst_55 [0] : vector<8x32xf32> to vector<32xf32>
      %151 = vector.shape_cast %150 : vector<32xf32> to vector<1x32xf32>
      %c0_56 = arith.constant 0 : index
      %c0_57 = arith.constant 0 : index
      %152 = vector.load %arg19[%c0_56, %c0_57] : memref<1x32xf32, #tpu.memory_space<vmem>>, vector<1x32xf32>
      %c0_58 = arith.constant 0 : index
      %c0_59 = arith.constant 0 : index
      %153 = vector.load %arg20[%c0_58, %c0_59] : memref<1x32xf32, #tpu.memory_space<vmem>>, vector<1x32xf32>
      %cst_60 = arith.constant dense<0.000000e+00> : vector<1xf32>
      %154 = vector.multi_reduction <add>, %151, %cst_60 [1] : vector<1x32xf32> to vector<1xf32>
      %155 = vector.shape_cast %154 : vector<1xf32> to vector<1x1xf32>
      %cst_61 = arith.constant 3.200000e+01 : f32
      %156 = vector.broadcast %cst_61 : f32 to vector<1x1xf32>
      %157 = arith.divf %155, %156 : vector<1x1xf32>
      %158 = vector.broadcast %157 : vector<1x1xf32> to vector<1x32xf32>
      %159 = arith.subf %151, %158 : vector<1x32xf32>
      %160 = arith.mulf %159, %159 : vector<1x32xf32>
      %cst_62 = arith.constant dense<0.000000e+00> : vector<1xf32>
      %161 = vector.multi_reduction <add>, %160, %cst_62 [1] : vector<1x32xf32> to vector<1xf32>
      %162 = vector.shape_cast %161 : vector<1xf32> to vector<1x1xf32>
      %cst_63 = arith.constant 3.200000e+01 : f32
      %163 = vector.broadcast %cst_63 : f32 to vector<1x1xf32>
      %164 = arith.divf %162, %163 : vector<1x1xf32>
      %165 = vector.broadcast %157 : vector<1x1xf32> to vector<1x32xf32>
      %166 = arith.subf %151, %165 : vector<1x32xf32>
      %cst_64 = arith.constant 9.99999974E-6 : f32
      %167 = vector.broadcast %cst_64 : f32 to vector<1x1xf32>
      %168 = arith.addf %164, %167 : vector<1x1xf32>
      %169 = math.rsqrt %168 : vector<1x1xf32>
      %170 = vector.broadcast %169 : vector<1x1xf32> to vector<1x32xf32>
      %171 = arith.mulf %166, %170 : vector<1x32xf32>
      %172 = arith.mulf %171, %152 : vector<1x32xf32>
      %173 = arith.addf %172, %153 : vector<1x32xf32>
      %174 = arith.truncf %173 : vector<1x32xf32> to vector<1x32xbf16>
      %c0_65 = arith.constant 0 : index
      %c0_66 = arith.constant 0 : index
      %175 = vector.load %arg21[%c0_65, %c0_66] : memref<32x128xbf16, #tpu.memory_space<vmem>>, vector<32x128xbf16>
      %cst_67 = arith.constant dense<0.000000e+00> : vector<1x128xf32>
      %176 = tpu.matmul %174, %175, %cst_67 {dimension_numbers = #tpu.dot_dimension_numbers<[1], [0], [0], [1], [0, 0, 1, 1], [], []>} : vector<1x32xbf16>, vector<32x128xbf16>, vector<1x128xf32> -> vector<1x128xf32>
      %177 = vector.shape_cast %176 : vector<1x128xf32> to vector<1x1x128xf32>
      %c0_68 = arith.constant 0 : index
      %c0_69 = arith.constant 0 : index
      %c0_70 = arith.constant 0 : index
      %178 = vector.load %arg22[%c0_68, %c0_69, %c0_70] : memref<1x1x128xf32, #tpu.memory_space<vmem>>, vector<1x1x128xf32>
      tpu.vector_store %arg22[%c0_68, %c0_69, %c0_70], %177 {strides = array<i32>} : memref<1x1x128xf32, #tpu.memory_space<vmem>>, vector<1x1x128xf32>,
    } else {
    }
    return
  }
  func.func @transform_0(%arg0: i32, %arg1: i32, %arg2: memref<2xi32, #tpu.memory_space<smem>>) -> (i32, i32, i32) {
    %c0_i32 = arith.constant 0 : i32
    %c0_i32_0 = arith.constant 0 : i32
    %c0_i32_1 = arith.constant 0 : i32
    return %arg0, %c0_i32, %c0_i32_0 : i32, i32, i32
  }
  func.func @transform_1(%arg0: i32, %arg1: i32, %arg2: memref<2xi32, #tpu.memory_space<smem>>) -> (i32, i32, i32) {
    %c0_i32 = arith.constant 0 : i32
    %c0_i32_0 = arith.constant 0 : i32
    %c0_i32_1 = arith.constant 0 : i32
    return %arg0, %c0_i32, %c0_i32_0 : i32, i32, i32
  }
  func.func @transform_2(%arg0: i32, %arg1: i32, %arg2: memref<2xi32, #tpu.memory_space<smem>>) -> (i32, i32) {
    %c0_i32 = arith.constant 0 : i32
    %c0_i32_0 = arith.constant 0 : i32
    %c0_i32_1 = arith.constant 0 : i32
    return %c0_i32, %c0_i32_0 : i32, i32
  }
  func.func @transform_3(%arg0: i32, %arg1: i32, %arg2: memref<2xi32, #tpu.memory_space<smem>>) -> (i32, i32) {
    %c0_i32 = arith.constant 0 : i32
    %c0_i32_0 = arith.constant 0 : i32
    %c0_i32_1 = arith.constant 0 : i32
    return %c0_i32, %c0_i32_0 : i32, i32
  }
  func.func @transform_4(%arg0: i32, %arg1: i32, %arg2: memref<2xi32, #tpu.memory_space<smem>>) -> (i32, i32, i32) {
    %c0_i32 = arith.constant 0 : i32
    %c0_i32_0 = arith.constant 0 : i32
    %c0_i32_1 = arith.constant 0 : i32
    %c0_i32_2 = arith.constant 0 : i32
    return %c0_i32, %c0_i32_0, %c0_i32_1 : i32, i32, i32
  }
  func.func @transform_5(%arg0: i32, %arg1: i32, %arg2: memref<2xi32, #tpu.memory_space<smem>>) -> (i32, i32, i32) {
    %c0_i32 = arith.constant 0 : i32
    %c0_i32_0 = arith.constant 0 : i32
    %c0_i32_1 = arith.constant 0 : i32
    %c0_i32_2 = arith.constant 0 : i32
    return %c0_i32, %c0_i32_0, %c0_i32_1 : i32, i32, i32
  }
  func.func @transform_6(%arg0: i32, %arg1: i32, %arg2: memref<2xi32, #tpu.memory_space<smem>>) -> (i32, i32, i32) {
    %c0_i32 = arith.constant 0 : i32
    %c0_i32_0 = arith.constant 0 : i32
    %c0_i32_1 = arith.constant 0 : i32
    %c0_i32_2 = arith.constant 0 : i32
    return %c0_i32, %c0_i32_0, %c0_i32_1 : i32, i32, i32
  }
  func.func @transform_7(%arg0: i32, %arg1: i32, %arg2: memref<2xi32, #tpu.memory_space<smem>>) -> (i32, i32, i32) {
    %c0_i32 = arith.constant 0 : i32
    %c0_i32_0 = arith.constant 0 : i32
    %c0_i32_1 = arith.constant 0 : i32
    %c0_i32_2 = arith.constant 0 : i32
    return %c0_i32, %c0_i32_0, %c0_i32_1 : i32, i32, i32
  }
  func.func @transform_8(%arg0: i32, %arg1: i32, %arg2: memref<2xi32, #tpu.memory_space<smem>>) -> (i32, i32, i32) {
    %c0_i32 = arith.constant 0 : i32
    %c0_i32_0 = arith.constant 0 : i32
    %c0_i32_1 = arith.constant 0 : i32
    %c0_i32_2 = arith.constant 0 : i32
    return %c0_i32, %c0_i32_0, %c0_i32_1 : i32, i32, i32
  }
  func.func @transform_9(%arg0: i32, %arg1: i32, %arg2: memref<2xi32, #tpu.memory_space<smem>>) -> (i32, i32, i32) {
    %c0_i32 = arith.constant 0 : i32
    %c0_i32_0 = arith.constant 0 : i32
    %c0_i32_1 = arith.constant 0 : i32
    %c0_i32_2 = arith.constant 0 : i32
    return %c0_i32, %c0_i32_0, %c0_i32_1 : i32, i32, i32
  }
  func.func @transform_10(%arg0: i32, %arg1: i32, %arg2: memref<2xi32, #tpu.memory_space<smem>>) -> (i32, i32, i32) {
    %c0_i32 = arith.constant 0 : i32
    %c0_i32_0 = arith.constant 0 : i32
    %c0_i32_1 = arith.constant 0 : i32
    %c0_i32_2 = arith.constant 0 : i32
    return %c0_i32, %c0_i32_0, %c0_i32_1 : i32, i32, i32
  }
  func.func @transform_11(%arg0: i32, %arg1: i32, %arg2: memref<2xi32, #tpu.memory_space<smem>>) -> (i32, i32, i32) {
    %c0_i32 = arith.constant 0 : i32
    %c0_i32_0 = arith.constant 0 : i32
    %c0_i32_1 = arith.constant 0 : i32
    %c0_i32_2 = arith.constant 0 : i32
    return %c0_i32, %c0_i32_0, %c0_i32_1 : i32, i32, i32
  }
  func.func @transform_12(%arg0: i32, %arg1: i32, %arg2: memref<2xi32, #tpu.memory_space<smem>>) -> (i32, i32, i32) {
    %c0_i32 = arith.constant 0 : i32
    %c0_i32_0 = arith.constant 0 : i32
    %c0_i32_1 = arith.constant 0 : i32
    %c0_i32_2 = arith.constant 0 : i32
    return %c0_i32, %c0_i32_0, %c0_i32_1 : i32, i32, i32
  }
  func.func @transform_13(%arg0: i32, %arg1: i32, %arg2: memref<2xi32, #tpu.memory_space<smem>>) -> (i32, i32, i32) {
    %c0_i32 = arith.constant 0 : i32
    %c0_i32_0 = arith.constant 0 : i32
    %c0_i32_1 = arith.constant 0 : i32
    %c0_i32_2 = arith.constant 0 : i32
    return %c0_i32, %c0_i32_0, %c0_i32_1 : i32, i32, i32
  }
  func.func @transform_14(%arg0: i32, %arg1: i32, %arg2: memref<2xi32, #tpu.memory_space<smem>>) -> (i32, i32, i32) {
    %c0_i32 = arith.constant 0 : i32
    %c0_i32_0 = arith.constant 0 : i32
    %c0_i32_1 = arith.constant 0 : i32
    %c0_i32_2 = arith.constant 0 : i32
    return %c0_i32, %c0_i32_0, %c0_i32_1 : i32, i32, i32
  }
  func.func @transform_15(%arg0: i32, %arg1: i32, %arg2: memref<2xi32, #tpu.memory_space<smem>>) -> (i32, i32, i32) {
    %c0_i32 = arith.constant 0 : i32
    %c0_i32_0 = arith.constant 0 : i32
    %c0_i32_1 = arith.constant 0 : i32
    %c0_i32_2 = arith.constant 0 : i32
    return %c0_i32, %c0_i32_0, %c0_i32_1 : i32, i32, i32
  }
  func.func @transform_16(%arg0: i32, %arg1: i32, %arg2: memref<2xi32, #tpu.memory_space<smem>>) -> (i32, i32) {
    %c0_i32 = arith.constant 0 : i32
    %c0_i32_0 = arith.constant 0 : i32
    %c0_i32_1 = arith.constant 0 : i32
    return %c0_i32, %c0_i32_0 : i32, i32
  }
  func.func @transform_17(%arg0: i32, %arg1: i32, %arg2: memref<2xi32, #tpu.memory_space<smem>>) -> (i32, i32) {
    %c0_i32 = arith.constant 0 : i32
    %c0_i32_0 = arith.constant 0 : i32
    %c0_i32_1 = arith.constant 0 : i32
    return %c0_i32, %c0_i32_0 : i32, i32
  }
  func.func @transform_18(%arg0: i32, %arg1: i32, %arg2: memref<2xi32, #tpu.memory_space<smem>>) -> (i32, i32) {
    %c0_i32 = arith.constant 0 : i32
    %c0_i32_0 = arith.constant 0 : i32
    %c0_i32_1 = arith.constant 0 : i32
    return %c0_i32, %c0_i32_0 : i32, i32
  }
  func.func @transform_19(%arg0: i32, %arg1: i32, %arg2: memref<2xi32, #tpu.memory_space<smem>>) -> (i32, i32, i32) {
    %c0_i32 = arith.constant 0 : i32
    %c0_i32_0 = arith.constant 0 : i32
    %c0_i32_1 = arith.constant 0 : i32
    return %arg0, %c0_i32, %c0_i32_0 : i32, i32, i32
  }
}

</mosaic_0001>

<llo_original>
// kernel: tpu_custom_call.1
$region0: #{tpu_custom_call.1}
  #allocation0 [shape = 'u32[]', space=smem, size = 0x4, offset = 0x4, fixed_abs, tag = 'smem constant byte address 0x4 - core index']
  #allocation1 [shape = 'u32[144,128]{1,0:T(1,128)}', space=vmem, size = 0x12000, scoped, tag = 'internal scratch']
  #allocation2 [shape = 'f32[1,8,32]{2,1,0:T(8,128)}', space=vmem, size = 0x1000, scoped, tag = 'scratch operand']
  #allocation3 [shape = 'f32[1,8,8]{2,1,0:T(8,128)}', space=vmem, size = 0x1000, scoped, tag = 'scratch operand']
  #allocation4 [shape = 's32[1]{0}', space=sflag, size = 0x4, scoped, tag = 'scoped memory for tpu_custom_call.1']
  #allocation5 [shape = 'u8[512]{0}', space=smem, size = 0x200, scoped, tag = 'prefetched SMEM operand 0']
  %s0 = inlined_call_operand.hbm [shape: s32[2], index: 0, kind: input, shape index: {}]
  %s1 = inlined_call_operand.hbm [shape: f32[2,8,32], index: 1, kind: input, shape index: {}]
  %s2 = inlined_call_operand.hbm [shape: f32[2,1,8], index: 2, kind: input, shape index: {}]
  %s3 = inlined_call_operand.vmem [shape: f32[1,32], index: 3, kind: input, shape index: {}]
  %s4 = inlined_call_operand.hbm [shape: f32[1,32], index: 4, kind: input, shape index: {}]
  %s5 = inlined_call_operand.vmem [shape: bf16[2,32,96], index: 5, kind: input, shape index: {}]
  %s6 = inlined_call_operand.hbm [shape: f32[2,1,96], index: 6, kind: input, shape index: {}]
  %s7 = inlined_call_operand.vmem [shape: bf16[2,32,32], index: 7, kind: input, shape index: {}]
  %s8 = inlined_call_operand.hbm [shape: f32[2,1,32], index: 8, kind: input, shape index: {}]
  %s9 = inlined_call_operand.hbm [shape: f32[2,1,32], index: 9, kind: input, shape index: {}]
  %s10 = inlined_call_operand.hbm [shape: f32[2,1,32], index: 10, kind: input, shape index: {}]
  %s11 = inlined_call_operand.vmem [shape: bf16[2,32,64], index: 11, kind: input, shape index: {}]
  %s12 = inlined_call_operand.hbm [shape: f32[2,1,64], index: 12, kind: input, shape index: {}]
  %s13 = inlined_call_operand.vmem [shape: bf16[2,64,32], index: 13, kind: input, shape index: {}]
  %s14 = inlined_call_operand.vmem [shape: f32[2,1,32], index: 14, kind: input, shape index: {}]
  %s15 = inlined_call_operand.vmem [shape: f32[2,1,32], index: 15, kind: input, shape index: {}]
  %s16 = inlined_call_operand.vmem [shape: f32[2,1,32], index: 16, kind: input, shape index: {}]
  %s17 = inlined_call_operand.vmem [shape: f32[1,32], index: 17, kind: input, shape index: {}]
  %s18 = inlined_call_operand.vmem [shape: f32[1,32], index: 18, kind: input, shape index: {}]
  %s19 = inlined_call_operand.vmem [shape: bf16[32,128], index: 19, kind: input, shape index: {}]
  %s20 = inlined_call_operand.hbm [shape: f32[2,1,128], index: 20, kind: output, shape index: {}]
  %s21 = sld [smem:[#allocation0]]
  $region149: #{tpu_custom_call.1} parent=0
    _
  %s23 = ssub.s32 1, %s21
  %s24 = scalar_select 0, %s23, %s21
  %26 = dma.hbm_to_smem %s0, 16, [#allocation5], [#allocation4]
  %27 = dma.done [#allocation4], 16
  %28 = sfence
  $region1: #{tpu_custom_call.1} parent=0
    #allocation6 [shape = 'u8[8192]{0}', space=vmem, size = 0x2000, scoped, tag = 'input window, operand 1']
    #allocation7 [shape = 's32[2]{0}', space=sflag, size = 0x8, scoped, tag = 'scoped memory for tpu_custom_call.1']
    #allocation8 [shape = 's32[2]{0}', space=sflag, size = 0x8, scoped, tag = 'scoped memory for tpu_custom_call.1']
    #allocation9 [shape = 'u8[1024]{0}', space=vmem, size = 0x400, scoped, tag = 'input window, operand 2']
    #allocation10 [shape = 's32[2]{0}', space=sflag, size = 0x8, scoped, tag = 'scoped memory for tpu_custom_call.1']
    #allocation11 [shape = 'u8[512]{0}', space=vmem, size = 0x400, scoped, tag = 'input window, operand 4, single buffered']
    #allocation12 [shape = 'u8[1024]{0}', space=vmem, size = 0x400, scoped, tag = 'input window, operand 6, single buffered']
    #allocation13 [shape = 's32[1]{0}', space=sflag, size = 0x4, scoped, tag = 'scoped memory for tpu_custom_call.1']
    #allocation14 [shape = 'u8[1024]{0}', space=vmem, size = 0x400, scoped, tag = 'input window, operand 8, single buffered']
    #allocation15 [shape = 'u8[1024]{0}', space=vmem, size = 0x400, scoped, tag = 'input window, operand 9, single buffered']
    #allocation16 [shape = 's32[1]{0}', space=sflag, size = 0x4, scoped, tag = 'scoped memory for tpu_custom_call.1']
    #allocation17 [shape = 'u8[1024]{0}', space=vmem, size = 0x400, scoped, tag = 'input window, operand 10, single buffered']
    #allocation18 [shape = 'u8[1024]{0}', space=vmem, size = 0x400, scoped, tag = 'input window, operand 12, single buffered']
    #allocation19 [shape = 's32[1]{0}', space=sflag, size = 0x4, scoped, tag = 'scoped memory for tpu_custom_call.1']
    #allocation20 [shape = 'u8[1024]{0}', space=vmem, size = 0x400, scoped, tag = 'output window, operand 0']
    %29 = vsyncpa [#allocation7], 0
    %s30 = scalar_lea.sflag [#allocation7], 1
    %31 = vsyncpa %s30, 0
    %32 = vsyncpa [#allocation10], 0
    %s33 = scalar_lea.sflag [#allocation10], 1
    %34 = vsyncpa %s33, 0
    %35 = vsyncpa [#allocation13], 0
    %36 = vsyncpa [#allocation16], 0
    %37 = vsyncpa [#allocation19], 0
    %38 = vsyncpa [#allocation8], 0
    %s39 = scalar_lea.sflag [#allocation8], 1
    %40 = vsyncpa %s39, 0
    loop: start=0, step=1, limit=6
    $region2: #{tpu_custom_call.1} parent=1 // loop_pre_header
      _
    $region3: #{tpu_custom_call.1} parent=1 // loop_header
      %s42 = sphi 0, %s46
      %p43 = scmp.ge.s32.totalorder %s42, 6
      %s49 = sphi 0, %s61
      %s50 = sphi 0, %s57
      %s51 = sphi 0, %s49
      %s52 = sphi 0, %s50
      %s53 = sphi 0, %s51
      %s54 = sphi 0, %s52
      %s64 = sphi 0, %s66
      %s67 = sphi 0, %s64
      %s68 = sphi 0, %s67
      %s84 = sphi 0, %s68
      %s90 = sphi 0, %s92
      %s93 = sphi 0, %s90
      %s94 = sphi 0, %s93
      %s110 = sphi 0, %s94
      %s114 = sphi 0, %s114
      %s116 = sphi 0, %s114
      %s117 = sphi 0, %s116
      %s131 = sphi 0, %s117
      %s135 = sphi 0, %s135
      %s137 = sphi 0, %s135
      %s138 = sphi 0, %s137
      %s152 = sphi 0, %s138
      %s156 = sphi 0, %s156
      %s158 = sphi 0, %s156
      %s159 = sphi 0, %s158
      %s173 = sphi 0, %s159
      %s177 = sphi 0, %s177
      %s179 = sphi 0, %s177
      %s180 = sphi 0, %s179
      %s194 = sphi 0, %s180
      %s198 = sphi 0, %s198
      %s200 = sphi 0, %s198
      %s201 = sphi 0, %s200
      %s215 = sphi 0, %s201
      %s219 = sphi 0, %s219
      %s221 = sphi 0, %s219
      %s222 = sphi 0, %s221
      %s236 = sphi 0, %s222
      %s240 = sphi 0, %s240
      %s242 = sphi 0, %s240
      %s243 = sphi 0, %s242
      %s257 = sphi 0, %s243
      %s261 = sphi 0, %s261
      %s263 = sphi 0, %s261
      %s264 = sphi 0, %s263
      %s278 = sphi 0, %s264
      %s282 = sphi 0, %s282
      %s284 = sphi 0, %s282
      %s285 = sphi 0, %s284
      %s299 = sphi 0, %s285
      %s303 = sphi 0, %s303
      %s305 = sphi 0, %s303
      %s306 = sphi 0, %s305
      %s320 = sphi 0, %s306
      %s324 = sphi 0, %s324
      %s326 = sphi 0, %s324
      %s327 = sphi 0, %s326
      %s341 = sphi 0, %s327
      %s345 = sphi 0, %s345
      %s347 = sphi 0, %s345
      %s348 = sphi 0, %s347
      %s362 = sphi 0, %s348
      %s366 = sphi 0, %s366
      %s368 = sphi 0, %s366
      %s369 = sphi 0, %s368
      %s383 = sphi 0, %s369
      %s387 = sphi 0, %s387
      %s389 = sphi 0, %s387
      %s390 = sphi 0, %s389
      %s404 = sphi 0, %s390
      %s408 = sphi 0, %s408
      %s410 = sphi 0, %s408
      %s411 = sphi 0, %s410
      %s425 = sphi 0, %s411
      %s429 = sphi 0, %s429
      %s431 = sphi 0, %s429
      %s432 = sphi 0, %s431
      %s446 = sphi 0, %s432
      %s450 = sphi 0, %s450
      %s452 = sphi 0, %s450
      %s453 = sphi 0, %s452
      %s467 = sphi 0, %s453
      %s473 = sphi 0, %s475
      %s476 = sphi 0, %s473
      %s477 = sphi 0, %s476
      %s493 = sphi 0, %s477
    $region4: #{tpu_custom_call.1} parent=1 // loop_header_branch
      %45 = sbr.rel (%p43) target = $region8
    $region5: #{tpu_custom_call.1} parent=1 // loop_body
      %s47 = ssub.s32 %s42, 1
      %s48 = ssub.s32 %s42, 2
      %s55 = sadd.s32 1, %s50
      %p56 = scmp.ge.s32.totalorder %s55, 2
      %s57 = scalar_select %p56, 0, %s55
      %s58 = sadd.s32 1, %s49
      %s59 = scalar_select %p56, %s58, %s49
      %p60 = scmp.ge.s32.totalorder %s59, 2
      %s61 = scalar_select %p60, 0, %s59
      %s62 = ssub.s32 %s49, %s61
      %p63 = scmp.eq.s32.totalorder %s62, 0
      %s65 = sadd.s32 %s64, 1
      %s66 = scalar_select %p63, %s64, %s65
      %p69 = pneg %p63
      %p70 = scmp.eq.s32.totalorder %s42, 3
      %p71 = por %p69, %p70
      %p72 = scmp.ne.s32.totalorder %s64, %s67
      %p73 = scmp.eq.s32.totalorder %s42, 0
      %p74 = por %p72, %p73
      %p75 = scmp.ne.s32.totalorder %s64, %s67
      %p76 = scmp.eq.s32.totalorder %s47, 3
      %p77 = por %p75, %p76
      %p78 = scmp.ne.s32.totalorder %s67, %s68
      %p79 = scmp.eq.s32.totalorder %s47, 0
      %p80 = por %p78, %p79
      %p81 = scmp.ne.s32.totalorder %s67, %s68
      %p82 = scmp.eq.s32.totalorder %s48, 3
      %p83 = por %p81, %p82
      %p85 = scmp.ne.s32.totalorder %s68, %s84
      %p86 = scmp.eq.s32.totalorder %s48, 0
      %p87 = por %p85, %p86
      %s88 = ssub.s32 %s49, %s61
      %p89 = scmp.eq.s32.totalorder %s88, 0
      %s91 = sadd.s32 %s90, 1
      %s92 = scalar_select %p89, %s90, %s91
      %p95 = pneg %p89
      %p96 = scmp.eq.s32.totalorder %s42, 3
      %p97 = por %p95, %p96
      %p98 = scmp.ne.s32.totalorder %s90, %s93
      %p99 = scmp.eq.s32.totalorder %s42, 0
      %p100 = por %p98, %p99
      %p101 = scmp.ne.s32.totalorder %s90, %s93
      %p102 = scmp.eq.s32.totalorder %s47, 3
      %p103 = por %p101, %p102
      %p104 = scmp.ne.s32.totalorder %s93, %s94
      %p105 = scmp.eq.s32.totalorder %s47, 0
      %p106 = por %p104, %p105
      %p107 = scmp.ne.s32.totalorder %s93, %s94
      %p108 = scmp.eq.s32.totalorder %s48, 3
      %p109 = por %p107, %p108
      %p111 = scmp.ne.s32.totalorder %s94, %s110
      %p112 = scmp.eq.s32.totalorder %s48, 0
      %p113 = por %p111, %p112
      %s115 = sadd.s32 %s114, 1
      %p118 = scmp.eq.s32.totalorder %s42, 3
      %p119 = scmp.ne.s32.totalorder %s114, %s116
      %p120 = scmp.eq.s32.totalorder %s42, 0
      %p121 = por %p119, %p120
      %p122 = scmp.ne.s32.totalorder %s114, %s116
      %p123 = scmp.eq.s32.totalorder %s47, 3
      %p124 = por %p122, %p123
      %p125 = scmp.ne.s32.totalorder %s116, %s117
      %p126 = scmp.eq.s32.totalorder %s47, 0
      %p127 = por %p125, %p126
      %p128 = scmp.ne.s32.totalorder %s116, %s117
      %p129 = scmp.eq.s32.totalorder %s48, 3
      %p130 = por %p128, %p129
      %p132 = scmp.ne.s32.totalorder %s117, %s131
      %p133 = scmp.eq.s32.totalorder %s48, 0
      %p134 = por %p132, %p133
      %s136 = sadd.s32 %s135, 1
      %p139 = scmp.eq.s32.totalorder %s42, 3
      %p140 = scmp.ne.s32.totalorder %s135, %s137
      %p141 = scmp.eq.s32.totalorder %s42, 0
      %p142 = por %p140, %p141
      %p143 = scmp.ne.s32.totalorder %s135, %s137
      %p144 = scmp.eq.s32.totalorder %s47, 3
      %p145 = por %p143, %p144
      %p146 = scmp.ne.s32.totalorder %s137, %s138
      %p147 = scmp.eq.s32.totalorder %s47, 0
      %p148 = por %p146, %p147
      %p149 = scmp.ne.s32.totalorder %s137, %s138
      %p150 = scmp.eq.s32.totalorder %s48, 3
      %p151 = por %p149, %p150
      %p153 = scmp.ne.s32.totalorder %s138, %s152
      %p154 = scmp.eq.s32.totalorder %s48, 0
      %p155 = por %p153, %p154
      %s157 = sadd.s32 %s156, 1
      %p160 = scmp.eq.s32.totalorder %s42, 3
      %p161 = scmp.ne.s32.totalorder %s156, %s158
      %p162 = scmp.eq.s32.totalorder %s42, 0
      %p163 = por %p161, %p162
      %p164 = scmp.ne.s32.totalorder %s156, %s158
      %p165 = scmp.eq.s32.totalorder %s47, 3
      %p166 = por %p164, %p165
      %p167 = scmp.ne.s32.totalorder %s158, %s159
      %p168 = scmp.eq.s32.totalorder %s47, 0
      %p169 = por %p167, %p168
      %p170 = scmp.ne.s32.totalorder %s158, %s159
      %p171 = scmp.eq.s32.totalorder %s48, 3
      %p172 = por %p170, %p171
      %p174 = scmp.ne.s32.totalorder %s159, %s173
      %p175 = scmp.eq.s32.totalorder %s48, 0
      %p176 = por %p174, %p175
      %s178 = sadd.s32 %s177, 1
      %p181 = scmp.eq.s32.totalorder %s42, 3
      %p182 = scmp.ne.s32.totalorder %s177, %s179
      %p183 = scmp.eq.s32.totalorder %s42, 0
      %p184 = por %p182, %p183
      %p185 = scmp.ne.s32.totalorder %s177, %s179
      %p186 = scmp.eq.s32.totalorder %s47, 3
      %p187 = por %p185, %p186
      %p188 = scmp.ne.s32.totalorder %s179, %s180
      %p189 = scmp.eq.s32.totalorder %s47, 0
      %p190 = por %p188, %p189
      %p191 = scmp.ne.s32.totalorder %s179, %s180
      %p192 = scmp.eq.s32.totalorder %s48, 3
      %p193 = por %p191, %p192
      %p195 = scmp.ne.s32.totalorder %s180, %s194
      %p196 = scmp.eq.s32.totalorder %s48, 0
      %p197 = por %p195, %p196
      %s199 = sadd.s32 %s198, 1
      %p202 = scmp.eq.s32.totalorder %s42, 3
      %p203 = scmp.ne.s32.totalorder %s198, %s200
      %p204 = scmp.eq.s32.totalorder %s42, 0
      %p205 = por %p203, %p204
      %p206 = scmp.ne.s32.totalorder %s198, %s200
      %p207 = scmp.eq.s32.totalorder %s47, 3
      %p208 = por %p206, %p207
      %p209 = scmp.ne.s32.totalorder %s200, %s201
      %p210 = scmp.eq.s32.totalorder %s47, 0
      %p211 = por %p209, %p210
      %p212 = scmp.ne.s32.totalorder %s200, %s201
      %p213 = scmp.eq.s32.totalorder %s48, 3
      %p214 = por %p212, %p213
      %p216 = scmp.ne.s32.totalorder %s201, %s215
      %p217 = scmp.eq.s32.totalorder %s48, 0
      %p218 = por %p216, %p217
      %s220 = sadd.s32 %s219, 1
      %p223 = scmp.eq.s32.totalorder %s42, 3
      %p224 = scmp.ne.s32.totalorder %s219, %s221
      %p225 = scmp.eq.s32.totalorder %s42, 0
      %p226 = por %p224, %p225
      %p227 = scmp.ne.s32.totalorder %s219, %s221
      %p228 = scmp.eq.s32.totalorder %s47, 3
      %p229 = por %p227, %p228
      %p230 = scmp.ne.s32.totalorder %s221, %s222
      %p231 = scmp.eq.s32.totalorder %s47, 0
      %p232 = por %p230, %p231
      %p233 = scmp.ne.s32.totalorder %s221, %s222
      %p234 = scmp.eq.s32.totalorder %s48, 3
      %p235 = por %p233, %p234
      %p237 = scmp.ne.s32.totalorder %s222, %s236
      %p238 = scmp.eq.s32.totalorder %s48, 0
      %p239 = por %p237, %p238
      %s241 = sadd.s32 %s240, 1
      %p244 = scmp.eq.s32.totalorder %s42, 3
      %p245 = scmp.ne.s32.totalorder %s240, %s242
      %p246 = scmp.eq.s32.totalorder %s42, 0
      %p247 = por %p245, %p246
      %p248 = scmp.ne.s32.totalorder %s240, %s242
      %p249 = scmp.eq.s32.totalorder %s47, 3
      %p250 = por %p248, %p249
      %p251 = scmp.ne.s32.totalorder %s242, %s243
      %p252 = scmp.eq.s32.totalorder %s47, 0
      %p253 = por %p251, %p252
      %p254 = scmp.ne.s32.totalorder %s242, %s243
      %p255 = scmp.eq.s32.totalorder %s48, 3
      %p256 = por %p254, %p255
      %p258 = scmp.ne.s32.totalorder %s243, %s257
      %p259 = scmp.eq.s32.totalorder %s48, 0
      %p260 = por %p258, %p259
      %s262 = sadd.s32 %s261, 1
      %p265 = scmp.eq.s32.totalorder %s42, 3
      %p266 = scmp.ne.s32.totalorder %s261, %s263
      %p267 = scmp.eq.s32.totalorder %s42, 0
      %p268 = por %p266, %p267
      %p269 = scmp.ne.s32.totalorder %s261, %s263
      %p270 = scmp.eq.s32.totalorder %s47, 3
      %p271 = por %p269, %p270
      %p272 = scmp.ne.s32.totalorder %s263, %s264
      %p273 = scmp.eq.s32.totalorder %s47, 0
      %p274 = por %p272, %p273
      %p275 = scmp.ne.s32.totalorder %s263, %s264
      %p276 = scmp.eq.s32.totalorder %s48, 3
      %p277 = por %p275, %p276
      %p279 = scmp.ne.s32.totalorder %s264, %s278
      %p280 = scmp.eq.s32.totalorder %s48, 0
      %p281 = por %p279, %p280
      %s283 = sadd.s32 %s282, 1
      %p286 = scmp.eq.s32.totalorder %s42, 3
      %p287 = scmp.ne.s32.totalorder %s282, %s284
      %p288 = scmp.eq.s32.totalorder %s42, 0
      %p289 = por %p287, %p288
      %p290 = scmp.ne.s32.totalorder %s282, %s284
      %p291 = scmp.eq.s32.totalorder %s47, 3
      %p292 = por %p290, %p291
      %p293 = scmp.ne.s32.totalorder %s284, %s285
      %p294 = scmp.eq.s32.totalorder %s47, 0
      %p295 = por %p293, %p294
      %p296 = scmp.ne.s32.totalorder %s284, %s285
      %p297 = scmp.eq.s32.totalorder %s48, 3
      %p298 = por %p296, %p297
      %p300 = scmp.ne.s32.totalorder %s285, %s299
      %p301 = scmp.eq.s32.totalorder %s48, 0
      %p302 = por %p300, %p301
      %s304 = sadd.s32 %s303, 1
      %p307 = scmp.eq.s32.totalorder %s42, 3
      %p308 = scmp.ne.s32.totalorder %s303, %s305
      %p309 = scmp.eq.s32.totalorder %s42, 0
      %p310 = por %p308, %p309
      %p311 = scmp.ne.s32.totalorder %s303, %s305
      %p312 = scmp.eq.s32.totalorder %s47, 3
      %p313 = por %p311, %p312
      %p314 = scmp.ne.s32.totalorder %s305, %s306
      %p315 = scmp.eq.s32.totalorder %s47, 0
      %p316 = por %p314, %p315
      %p317 = scmp.ne.s32.totalorder %s305, %s306
      %p318 = scmp.eq.s32.totalorder %s48, 3
      %p319 = por %p317, %p318
      %p321 = scmp.ne.s32.totalorder %s306, %s320
      %p322 = scmp.eq.s32.totalorder %s48, 0
      %p323 = por %p321, %p322
      %s325 = sadd.s32 %s324, 1
      %p328 = scmp.eq.s32.totalorder %s42, 3
      %p329 = scmp.ne.s32.totalorder %s324, %s326
      %p330 = scmp.eq.s32.totalorder %s42, 0
      %p331 = por %p329, %p330
      %p332 = scmp.ne.s32.totalorder %s324, %s326
      %p333 = scmp.eq.s32.totalorder %s47, 3
      %p334 = por %p332, %p333
      %p335 = scmp.ne.s32.totalorder %s326, %s327
      %p336 = scmp.eq.s32.totalorder %s47, 0
      %p337 = por %p335, %p336
      %p338 = scmp.ne.s32.totalorder %s326, %s327
      %p339 = scmp.eq.s32.totalorder %s48, 3
      %p340 = por %p338, %p339
      %p342 = scmp.ne.s32.totalorder %s327, %s341
      %p343 = scmp.eq.s32.totalorder %s48, 0
      %p344 = por %p342, %p343
      %s346 = sadd.s32 %s345, 1
      %p349 = scmp.eq.s32.totalorder %s42, 3
      %p350 = scmp.ne.s32.totalorder %s345, %s347
      %p351 = scmp.eq.s32.totalorder %s42, 0
      %p352 = por %p350, %p351
      %p353 = scmp.ne.s32.totalorder %s345, %s347
      %p354 = scmp.eq.s32.totalorder %s47, 3
      %p355 = por %p353, %p354
      %p356 = scmp.ne.s32.totalorder %s347, %s348
      %p357 = scmp.eq.s32.totalorder %s47, 0
      %p358 = por %p356, %p357
      %p359 = scmp.ne.s32.totalorder %s347, %s348
      %p360 = scmp.eq.s32.totalorder %s48, 3
      %p361 = por %p359, %p360
      %p363 = scmp.ne.s32.totalorder %s348, %s362
      %p364 = scmp.eq.s32.totalorder %s48, 0
      %p365 = por %p363, %p364
      %s367 = sadd.s32 %s366, 1
      %p370 = scmp.eq.s32.totalorder %s42, 3
      %p371 = scmp.ne.s32.totalorder %s366, %s368
      %p372 = scmp.eq.s32.totalorder %s42, 0
      %p373 = por %p371, %p372
      %p374 = scmp.ne.s32.totalorder %s366, %s368
      %p375 = scmp.eq.s32.totalorder %s47, 3
      %p376 = por %p374, %p375
      %p377 = scmp.ne.s32.totalorder %s368, %s369
      %p378 = scmp.eq.s32.totalorder %s47, 0
      %p379 = por %p377, %p378
      %p380 = scmp.ne.s32.totalorder %s368, %s369
      %p381 = scmp.eq.s32.totalorder %s48, 3
      %p382 = por %p380, %p381
      %p384 = scmp.ne.s32.totalorder %s369, %s383
      %p385 = scmp.eq.s32.totalorder %s48, 0
      %p386 = por %p384, %p385
      %s388 = sadd.s32 %s387, 1
      %p391 = scmp.eq.s32.totalorder %s42, 3
      %p392 = scmp.ne.s32.totalorder %s387, %s389
      %p393 = scmp.eq.s32.totalorder %s42, 0
      %p394 = por %p392, %p393
      %p395 = scmp.ne.s32.totalorder %s387, %s389
      %p396 = scmp.eq.s32.totalorder %s47, 3
      %p397 = por %p395, %p396
      %p398 = scmp.ne.s32.totalorder %s389, %s390
      %p399 = scmp.eq.s32.totalorder %s47, 0
      %p400 = por %p398, %p399
      %p401 = scmp.ne.s32.totalorder %s389, %s390
      %p402 = scmp.eq.s32.totalorder %s48, 3
      %p403 = por %p401, %p402
      %p405 = scmp.ne.s32.totalorder %s390, %s404
      %p406 = scmp.eq.s32.totalorder %s48, 0
      %p407 = por %p405, %p406
      %s409 = sadd.s32 %s408, 1
      %p412 = scmp.eq.s32.totalorder %s42, 3
      %p413 = scmp.ne.s32.totalorder %s408, %s410
      %p414 = scmp.eq.s32.totalorder %s42, 0
      %p415 = por %p413, %p414
      %p416 = scmp.ne.s32.totalorder %s408, %s410
      %p417 = scmp.eq.s32.totalorder %s47, 3
      %p418 = por %p416, %p417
      %p419 = scmp.ne.s32.totalorder %s410, %s411
      %p420 = scmp.eq.s32.totalorder %s47, 0
      %p421 = por %p419, %p420
      %p422 = scmp.ne.s32.totalorder %s410, %s411
      %p423 = scmp.eq.s32.totalorder %s48, 3
      %p424 = por %p422, %p423
      %p426 = scmp.ne.s32.totalorder %s411, %s425
      %p427 = scmp.eq.s32.totalorder %s48, 0
      %p428 = por %p426, %p427
      %s430 = sadd.s32 %s429, 1
      %p433 = scmp.eq.s32.totalorder %s42, 3
      %p434 = scmp.ne.s32.totalorder %s429, %s431
      %p435 = scmp.eq.s32.totalorder %s42, 0
      %p436 = por %p434, %p435
      %p437 = scmp.ne.s32.totalorder %s429, %s431
      %p438 = scmp.eq.s32.totalorder %s47, 3
      %p439 = por %p437, %p438
      %p440 = scmp.ne.s32.totalorder %s431, %s432
      %p441 = scmp.eq.s32.totalorder %s47, 0
      %p442 = por %p440, %p441
      %p443 = scmp.ne.s32.totalorder %s431, %s432
      %p444 = scmp.eq.s32.totalorder %s48, 3
      %p445 = por %p443, %p444
      %p447 = scmp.ne.s32.totalorder %s432, %s446
      %p448 = scmp.eq.s32.totalorder %s48, 0
      %p449 = por %p447, %p448
      %s451 = sadd.s32 %s450, 1
      %p454 = scmp.eq.s32.totalorder %s42, 3
      %p455 = scmp.ne.s32.totalorder %s450, %s452
      %p456 = scmp.eq.s32.totalorder %s42, 0
      %p457 = por %p455, %p456
      %p458 = scmp.ne.s32.totalorder %s450, %s452
      %p459 = scmp.eq.s32.totalorder %s47, 3
      %p460 = por %p458, %p459
      %p461 = scmp.ne.s32.totalorder %s452, %s453
      %p462 = scmp.eq.s32.totalorder %s47, 0
      %p463 = por %p461, %p462
      %p464 = scmp.ne.s32.totalorder %s452, %s453
      %p465 = scmp.eq.s32.totalorder %s48, 3
      %p466 = por %p464, %p465
      %p468 = scmp.ne.s32.totalorder %s453, %s467
      %p469 = scmp.eq.s32.totalorder %s48, 0
      %p470 = por %p468, %p469
      %s471 = ssub.s32 %s49, %s61
      %p472 = scmp.eq.s32.totalorder %s471, 0
      %s474 = sadd.s32 %s473, 1
      %s475 = scalar_select %p472, %s473, %s474
      %p478 = pneg %p472
      %p479 = scmp.eq.s32.totalorder %s42, 3
      %p480 = por %p478, %p479
      %p481 = scmp.ne.s32.totalorder %s473, %s476
      %p482 = scmp.eq.s32.totalorder %s42, 0
      %p483 = por %p481, %p482
      %p484 = scmp.ne.s32.totalorder %s473, %s476
      %p485 = scmp.eq.s32.totalorder %s47, 3
      %p486 = por %p484, %p485
      %p487 = scmp.ne.s32.totalorder %s476, %s477
      %p488 = scmp.eq.s32.totalorder %s47, 0
      %p489 = por %p487, %p488
      %p490 = scmp.ne.s32.totalorder %s476, %s477
      %p491 = scmp.eq.s32.totalorder %s48, 3
      %p492 = por %p490, %p491
      %p494 = scmp.ne.s32.totalorder %s477, %s493
      %p495 = scmp.eq.s32.totalorder %s48, 0
      %p496 = por %p494, %p495
      %p497 = scmp.le.s32.totalorder 1, %s42
      %p498 = scmp.lt.s32.totalorder %s42, 5
      %p499 = pnand %p497, %p498
      %p500 = pneg %p499
      // Predicated region
      $region9: #{tpu_custom_call.1} parent=5 // pred_check
        _
      $region10: #{tpu_custom_call.1} parent=5 // pred_check_branch
        %502 = sbr.rel (%p499) target = $region12
      $region11: #{tpu_custom_call.1} parent=5 // pred_region
        %s503 = ssub.s32 %s42, 1
        // Predicated region
        $region13: #{tpu_custom_call.1} parent=11 // pred_check
          %p504 = pneg %p127
        $region14: #{tpu_custom_call.1} parent=11 // pred_check_branch
          %506 = sbr.rel (%p504) target = $region16
        $region15: #{tpu_custom_call.1} parent=11 // pred_region
          _
        $region16: #{tpu_custom_call.1} parent=11 // pred_fallthru
          _
        // Predicated region
        $region17: #{tpu_custom_call.1} parent=11 // pred_check
          %p507 = pneg %p148
        $region18: #{tpu_custom_call.1} parent=11 // pred_check_branch
          %509 = sbr.rel (%p507) target = $region20
        $region19: #{tpu_custom_call.1} parent=11 // pred_region
          %s511 = ssub.s32 16, 16
          %512 = vsyncadd [#allocation10], %s511
          %s514 = sshll.u32 [#allocation11], 4
          %s515 = int_to_ptr.vmem [resolvable:$true] %s514
          %517 = dma.hbm_to_vmem [thread:$0]  %s4, 16, %s515, [#allocation10]
        $region20: #{tpu_custom_call.1} parent=11 // pred_fallthru
          _
        // Predicated region
        $region21: #{tpu_custom_call.1} parent=11 // pred_check
          %p518 = pneg %p169
        $region22: #{tpu_custom_call.1} parent=11 // pred_check_branch
          %520 = sbr.rel (%p518) target = $region24
        $region23: #{tpu_custom_call.1} parent=11 // pred_region
          _
        $region24: #{tpu_custom_call.1} parent=11 // pred_fallthru
          _
        // Predicated region
        $region25: #{tpu_custom_call.1} parent=11 // pred_check
          %p521 = pneg %p190
        $region26: #{tpu_custom_call.1} parent=11 // pred_check_branch
          %523 = sbr.rel (%p521) target = $region28
        $region27: #{tpu_custom_call.1} parent=11 // pred_region
          %s525 = ssub.s32 32, 32
          %526 = vsyncadd [#allocation13], %s525
          %s527 = sshll.u32 [#allocation12], 4
          %s528 = int_to_ptr.vmem [resolvable:$true] %s527
          %533 = dma.hbm_to_vmem [thread:$0]  %s6, 32, %s528, [#allocation13], 16, 16, 1
        $region28: #{tpu_custom_call.1} parent=11 // pred_fallthru
          _
        // Predicated region
        $region29: #{tpu_custom_call.1} parent=11 // pred_check
          %p534 = pneg %p211
        $region30: #{tpu_custom_call.1} parent=11 // pred_check_branch
          %536 = sbr.rel (%p534) target = $region32
        $region31: #{tpu_custom_call.1} parent=11 // pred_region
          _
        $region32: #{tpu_custom_call.1} parent=11 // pred_fallthru
          _
        // Predicated region
        $region33: #{tpu_custom_call.1} parent=11 // pred_check
          %p537 = pneg %p232
        $region34: #{tpu_custom_call.1} parent=11 // pred_check_branch
          %539 = sbr.rel (%p537) target = $region36
        $region35: #{tpu_custom_call.1} parent=11 // pred_region
          %s541 = ssub.s32 32, 32
          %542 = vsyncadd [#allocation13], %s541
          %s543 = sshll.u32 [#allocation14], 4
          %s544 = int_to_ptr.vmem [resolvable:$true] %s543
          %549 = dma.hbm_to_vmem [thread:$0]  %s8, 32, %s544, [#allocation13], 16, 16, 1
        $region36: #{tpu_custom_call.1} parent=11 // pred_fallthru
          _
        // Predicated region
        $region37: #{tpu_custom_call.1} parent=11 // pred_check
          %p550 = pneg %p253
        $region38: #{tpu_custom_call.1} parent=11 // pred_check_branch
          %552 = sbr.rel (%p550) target = $region40
        $region39: #{tpu_custom_call.1} parent=11 // pred_region
          %s554 = ssub.s32 32, 32
          %555 = vsyncadd [#allocation16], %s554
          %s556 = sshll.u32 [#allocation15], 4
          %s557 = int_to_ptr.vmem [resolvable:$true] %s556
          %562 = dma.hbm_to_vmem [thread:$0]  %s9, 32, %s557, [#allocation16], 16, 16, 1
        $region40: #{tpu_custom_call.1} parent=11 // pred_fallthru
          _
        // Predicated region
        $region41: #{tpu_custom_call.1} parent=11 // pred_check
          %p563 = pneg %p274
        $region42: #{tpu_custom_call.1} parent=11 // pred_check_branch
          %565 = sbr.rel (%p563) target = $region44
        $region43: #{tpu_custom_call.1} parent=11 // pred_region
          %s567 = ssub.s32 32, 32
          %568 = vsyncadd [#allocation16], %s567
          %s569 = sshll.u32 [#allocation17], 4
          %s570 = int_to_ptr.vmem [resolvable:$true] %s569
          %575 = dma.hbm_to_vmem [thread:$0]  %s10, 32, %s570, [#allocation16], 16, 16, 1
        $region44: #{tpu_custom_call.1} parent=11 // pred_fallthru
          _
        // Predicated region
        $region45: #{tpu_custom_call.1} parent=11 // pred_check
          %p576 = pneg %p295
        $region46: #{tpu_custom_call.1} parent=11 // pred_check_branch
          %578 = sbr.rel (%p576) target = $region48
        $region47: #{tpu_custom_call.1} parent=11 // pred_region
          _
        $region48: #{tpu_custom_call.1} parent=11 // pred_fallthru
          _
        // Predicated region
        $region49: #{tpu_custom_call.1} parent=11 // pred_check
          %p579 = pneg %p316
        $region50: #{tpu_custom_call.1} parent=11 // pred_check_branch
          %581 = sbr.rel (%p579) target = $region52
        $region51: #{tpu_custom_call.1} parent=11 // pred_region
          %s583 = ssub.s32 32, 32
          %584 = vsyncadd [#allocation19], %s583
          %s585 = sshll.u32 [#allocation18], 4
          %s586 = int_to_ptr.vmem [resolvable:$true] %s585
          %591 = dma.hbm_to_vmem [thread:$0]  %s12, 32, %s586, [#allocation19], 16, 16, 1
        $region52: #{tpu_custom_call.1} parent=11 // pred_fallthru
          _
        // Predicated region
        $region53: #{tpu_custom_call.1} parent=11 // pred_check
          %p592 = pneg %p337
        $region54: #{tpu_custom_call.1} parent=11 // pred_check_branch
          %594 = sbr.rel (%p592) target = $region56
        $region55: #{tpu_custom_call.1} parent=11 // pred_region
          _
        $region56: #{tpu_custom_call.1} parent=11 // pred_fallthru
          _
        // Predicated region
        $region57: #{tpu_custom_call.1} parent=11 // pred_check
          %p595 = pneg %p358
        $region58: #{tpu_custom_call.1} parent=11 // pred_check_branch
          %597 = sbr.rel (%p595) target = $region60
        $region59: #{tpu_custom_call.1} parent=11 // pred_region
          _
        $region60: #{tpu_custom_call.1} parent=11 // pred_fallthru
          _
        // Predicated region
        $region61: #{tpu_custom_call.1} parent=11 // pred_check
          %p598 = pneg %p379
        $region62: #{tpu_custom_call.1} parent=11 // pred_check_branch
          %600 = sbr.rel (%p598) target = $region64
        $region63: #{tpu_custom_call.1} parent=11 // pred_region
          _
        $region64: #{tpu_custom_call.1} parent=11 // pred_fallthru
          _
        // Predicated region
        $region65: #{tpu_custom_call.1} parent=11 // pred_check
          %p601 = pneg %p400
        $region66: #{tpu_custom_call.1} parent=11 // pred_check_branch
          %603 = sbr.rel (%p601) target = $region68
        $region67: #{tpu_custom_call.1} parent=11 // pred_region
          _
        $region68: #{tpu_custom_call.1} parent=11 // pred_fallthru
          _
        // Predicated region
        $region69: #{tpu_custom_call.1} parent=11 // pred_check
          %p604 = pneg %p421
        $region70: #{tpu_custom_call.1} parent=11 // pred_check_branch
          %606 = sbr.rel (%p604) target = $region72
        $region71: #{tpu_custom_call.1} parent=11 // pred_region
          _
        $region72: #{tpu_custom_call.1} parent=11 // pred_fallthru
          _
        // Predicated region
        $region73: #{tpu_custom_call.1} parent=11 // pred_check
          %p607 = pneg %p442
        $region74: #{tpu_custom_call.1} parent=11 // pred_check_branch
          %609 = sbr.rel (%p607) target = $region76
        $region75: #{tpu_custom_call.1} parent=11 // pred_region
          _
        $region76: #{tpu_custom_call.1} parent=11 // pred_fallthru
          _
        // Predicated region
        $region77: #{tpu_custom_call.1} parent=11 // pred_check
          %p610 = pneg %p463
        $region78: #{tpu_custom_call.1} parent=11 // pred_check_branch
          %612 = sbr.rel (%p610) target = $region80
        $region79: #{tpu_custom_call.1} parent=11 // pred_region
          _
        $region80: #{tpu_custom_call.1} parent=11 // pred_fallthru
          _
      $region12: #{tpu_custom_call.1} parent=5 // pred_fallthru
        _
      %p613 = scmp.lt.s32.totalorder %s42, 4
      // Predicated region
      $region81: #{tpu_custom_call.1} parent=5 // pred_check
        %p614 = pneg %p613
      $region82: #{tpu_custom_call.1} parent=5 // pred_check_branch
        %616 = sbr.rel (%p614) target = $region84
      $region83: #{tpu_custom_call.1} parent=5 // pred_region
        // Predicated region
        $region85: #{tpu_custom_call.1} parent=83 // pred_check
          %p617 = pneg %p74
        $region86: #{tpu_custom_call.1} parent=83 // pred_check_branch
          %619 = sbr.rel (%p617) target = $region88
        $region87: #{tpu_custom_call.1} parent=83 // pred_region
          %s620 = sand.u32 %s64, 1
          %s621 = scalar_lea.sflag [#allocation7], %s620
          %s622 = sand.u32 %s64, 1
          %s623 = smul.addr %s622, 8
          %s624 = scalar_lea.vmem [#allocation6], %s623
          %s626 = ssub.s32 128, 128
          %627 = vsyncadd %s621, %s626
          %s628 = smul.addr %s49, 128
          %s629 = scalar_lea.hbm %s1, %s628
          %s631 = sshll.u32 %s624, 4
          %s632 = int_to_ptr.vmem [resolvable:$true] %s631
          %634 = dma.hbm_to_vmem [thread:$0]  %s629, 128, %s632, %s621
        $region88: #{tpu_custom_call.1} parent=83 // pred_fallthru
          _
        // Predicated region
        $region89: #{tpu_custom_call.1} parent=83 // pred_check
          %p635 = pneg %p100
        $region90: #{tpu_custom_call.1} parent=83 // pred_check_branch
          %637 = sbr.rel (%p635) target = $region92
        $region91: #{tpu_custom_call.1} parent=83 // pred_region
          %s638 = sand.u32 %s42, 1
          %s639 = scalar_lea.sflag [#allocation10], %s638
          %s640 = sand.u32 %s90, 1
          %s641 = scalar_lea.vmem [#allocation9], %s640
          %s643 = ssub.s32 16, 16
          %644 = vsyncadd %s639, %s643
          %s645 = smul.addr %s49, 16
          %s646 = scalar_lea.hbm %s2, %s645
          %s648 = sshll.u32 %s641, 4
          %s649 = int_to_ptr.vmem [resolvable:$true] %s648
          %651 = dma.hbm_to_vmem [thread:$0]  %s646, 16, %s649, %s639
        $region92: #{tpu_custom_call.1} parent=83 // pred_fallthru
          _
      $region84: #{tpu_custom_call.1} parent=5 // pred_fallthru
        _
      %p652 = scmp.le.s32.totalorder 1, %s42
      %p653 = scmp.lt.s32.totalorder %s42, 5
      %p654 = pnand %p652, %p653
      %p655 = pneg %p654
      // Predicated region
      $region93: #{tpu_custom_call.1} parent=5 // pred_check
        _
      $region94: #{tpu_custom_call.1} parent=5 // pred_check_branch
        %657 = sbr.rel (%p654) target = $region96
      $region95: #{tpu_custom_call.1} parent=5 // pred_region
        %s658 = ssub.s32 %s42, 1
        %s659 = sand.u32 %s67, 1
        %s660 = scalar_lea.sflag [#allocation7], %s659
        %s661 = sand.u32 %s67, 1
        %s662 = smul.addr %s661, 8
        %s663 = scalar_lea.vmem [#allocation6], %s662
        // Predicated region
        $region97: #{tpu_custom_call.1} parent=95 // pred_check
          %p664 = pneg %p80
        $region98: #{tpu_custom_call.1} parent=95 // pred_check_branch
          %666 = sbr.rel (%p664) target = $region100
        $region99: #{tpu_custom_call.1} parent=95 // pred_region
          %667 = dma.done %s660, 128
        $region100: #{tpu_custom_call.1} parent=95 // pred_fallthru
          _
        %s668 = sand.u32 %s47, 1
        %s669 = scalar_lea.sflag [#allocation10], %s668
        %s670 = sand.u32 %s93, 1
        %s671 = scalar_lea.vmem [#allocation9], %s670
        // Predicated region
        $region101: #{tpu_custom_call.1} parent=95 // pred_check
          %p672 = pneg %p106
        $region102: #{tpu_custom_call.1} parent=95 // pred_check_branch
          %674 = sbr.rel (%p672) target = $region104
        $region103: #{tpu_custom_call.1} parent=95 // pred_region
          %675 = dma.done %s669, 16
        $region104: #{tpu_custom_call.1} parent=95 // pred_fallthru
          _
        // Predicated region
        $region105: #{tpu_custom_call.1} parent=95 // pred_check
          %p676 = pneg %p148
        $region106: #{tpu_custom_call.1} parent=95 // pred_check_branch
          %678 = sbr.rel (%p676) target = $region108
        $region107: #{tpu_custom_call.1} parent=95 // pred_region
          %679 = dma.done [#allocation10], 16
        $region108: #{tpu_custom_call.1} parent=95 // pred_fallthru
          _
        // Predicated region
        $region109: #{tpu_custom_call.1} parent=95 // pred_check
          %p680 = pneg %p190
        $region110: #{tpu_custom_call.1} parent=95 // pred_check_branch
          %682 = sbr.rel (%p680) target = $region112
        $region111: #{tpu_custom_call.1} parent=95 // pred_region
          %683 = dma.done [#allocation13], 32
        $region112: #{tpu_custom_call.1} parent=95 // pred_fallthru
          _
        // Predicated region
        $region113: #{tpu_custom_call.1} parent=95 // pred_check
          %p684 = pneg %p232
        $region114: #{tpu_custom_call.1} parent=95 // pred_check_branch
          %686 = sbr.rel (%p684) target = $region116
        $region115: #{tpu_custom_call.1} parent=95 // pred_region
          %687 = dma.done [#allocation13], 32
        $region116: #{tpu_custom_call.1} parent=95 // pred_fallthru
          _
        // Predicated region
        $region117: #{tpu_custom_call.1} parent=95 // pred_check
          %p688 = pneg %p253
        $region118: #{tpu_custom_call.1} parent=95 // pred_check_branch
          %690 = sbr.rel (%p688) target = $region120
        $region119: #{tpu_custom_call.1} parent=95 // pred_region
          %691 = dma.done [#allocation16], 32
        $region120: #{tpu_custom_call.1} parent=95 // pred_fallthru
          _
        // Predicated region
        $region121: #{tpu_custom_call.1} parent=95 // pred_check
          %p692 = pneg %p274
        $region122: #{tpu_custom_call.1} parent=95 // pred_check_branch
          %694 = sbr.rel (%p692) target = $region124
        $region123: #{tpu_custom_call.1} parent=95 // pred_region
          %695 = dma.done [#allocation16], 32
        $region124: #{tpu_custom_call.1} parent=95 // pred_fallthru
          _
        // Predicated region
        $region125: #{tpu_custom_call.1} parent=95 // pred_check
          %p696 = pneg %p316
        $region126: #{tpu_custom_call.1} parent=95 // pred_check_branch
          %698 = sbr.rel (%p696) target = $region128
        $region127: #{tpu_custom_call.1} parent=95 // pred_region
          %699 = dma.done [#allocation19], 32
        $region128: #{tpu_custom_call.1} parent=95 // pred_fallthru
          _
        %s700 = sand.u32 %s67, 1
        %s701 = scalar_lea.sflag [#allocation7], %s700
        %s702 = sand.u32 %s67, 1
        %s703 = smul.addr %s702, 8
        %s704 = scalar_lea.vmem [#allocation6], %s703
        %p705 = pneg %p80
        %p706 = pneg %p77
        %s707 = sand.u32 %s47, 1
        %s708 = scalar_lea.sflag [#allocation10], %s707
        %s709 = sand.u32 %s93, 1
        %s710 = scalar_lea.vmem [#allocation9], %s709
        %p711 = pneg %p106
        %p712 = pneg %p103
        %p713 = pneg %p127
        %p714 = pneg %p124
        %p715 = pneg %p148
        %p716 = pneg %p145
        %p717 = pneg %p169
        %p718 = pneg %p166
        %p719 = pneg %p190
        %p720 = pneg %p187
        %p721 = pneg %p211
        %p722 = pneg %p208
        %p723 = pneg %p232
        %p724 = pneg %p229
        %p725 = pneg %p253
        %p726 = pneg %p250
        %p727 = pneg %p274
        %p728 = pneg %p271
        %p729 = pneg %p295
        %p730 = pneg %p292
        %p731 = pneg %p316
        %p732 = pneg %p313
        %p733 = pneg %p337
        %p734 = pneg %p334
        %p735 = pneg %p358
        %p736 = pneg %p355
        %p737 = pneg %p379
        %p738 = pneg %p376
        %p739 = pneg %p400
        %p740 = pneg %p397
        %p741 = pneg %p421
        %p742 = pneg %p418
        %p743 = pneg %p442
        %p744 = pneg %p439
        %p745 = pneg %p463
        %p746 = pneg %p460
        %p747 = pneg %p489
        %p748 = pneg %p486
        %s749 = sand.u32 %s476, 1
        %s750 = scalar_lea.sflag [#allocation8], %s749
        %s751 = sand.u32 %s476, 1
        %s752 = scalar_lea.vmem [#allocation20], %s751
        %p754 = scmp.eq.s32.totalorder %s52, 0
        // Predicated region
        $region129: #{tpu_custom_call.1} parent=95 // pred_check
          %p755 = pneg %p754
        $region130: #{tpu_custom_call.1} parent=95 // pred_check_branch
          %757 = sbr.rel (%p755) target = $region132
        $region131: #{tpu_custom_call.1} parent=95 // pred_region
          %v758 = vld [vmem:[%s663] sm:$0xff]
          %v759 = vld [vmem:[%s3] sm:$0x1]
          %v760 = vld [vmem:[#allocation11] sm:$0x1]
          %vm761 = vcmask 261120
          %v762 = vsel %vm761, %v758, 0.0
          %763 = vadd.xlane.f32.xlu0 %v762
          %v764 = vpop.xlane.xlu0 %763
          %v765 = vrcp.pop 32.0
          %v766 = vmul.f32 %v764, %v765
          %v767 = vsub.f32 %v758, %v766
          %v768 = vmul.f32 %v767, %v767
          %v769 = vsel %vm761, %v768, 0.0
          %770 = vadd.xlane.f32.xlu0 %v769
          %v771 = vpop.xlane.xlu0 %770
          %v772 = vmul.f32 %v771, %v765
          %v773 = vadd.f32 %v772, 1e-05
          %v774 = vrsqrt.pop %v773
          %v775 = vmul.f32 %v767, %v774
          %v777 = vlaneseq
          %v778 = vshrl.u32 %v777, 7
          %v779 = vsub.s32 0, %v778
          %v780 = vrot.slane %v759, %v779
          %v782 = vmul.f32 %v775, %v780
          %v784 = vlaneseq
          %v785 = vshrl.u32 %v784, 7
          %v786 = vsub.s32 0, %v785
          %v787 = vrot.slane %v760, %v786
          %v789 = vadd.f32 %v782, %v787
          %790 = vst.msk [vmem:[#allocation2] sm:$0xff] %vm761, %v789
          %v791 = vlaneseq
          %v792 = vshrl.u32 %v791, 7
          %v793 = vlaneseq
          %v794 = vand.u32 %v793, 127
          %vm795 = vcmp.gt.s32.totalorder %v794, %v792
          %v796 = vsel %vm795, -inf, 0.0
          %v797 = vld [vmem:[%s671] sm:$0x1]
          %v799 = vlaneseq
          %v800 = vshrl.u32 %v799, 7
          %v801 = vsub.s32 0, %v800
          %v802 = vrot.slane %v797, %v801
          %v804 = vadd.f32 %v796, %v802
          %vm805 = vcmask 64512
          %806 = vst.msk [vmem:[#allocation3] sm:$0xff] %vm805, %v804
        $region132: #{tpu_custom_call.1} parent=95 // pred_fallthru
          _
        %v807 = vld [vmem:[#allocation2] sm:$0xff]
        %v808 = vld [vmem:[#allocation3] sm:$0xff]
        %v809 = vpack.c.bf16 %v807, %v807
        %s810 = smul.u32 %s52, 4
        %s811 = smul.addr %s810, 4
        %s812 = scalar_lea.vmem %s5, %s811
        %v813 = vld [vmem:[%s812] sm:$0xf]
        %v814 = vld [vmem:[%s812 + $0x4] sm:$0xf]
        %v815 = vld [vmem:[%s812 + $0x8] sm:$0xf]
        %v816 = vld [vmem:[%s812 + $0xc] sm:$0xf]
        %s817 = scalar_lea.vmem [#allocation12], %s52
        %v818 = vld [vmem:[%s817] sm:$0x1]
        %v820 = vlaneseq
        %v821 = vshrl.u32 %v820, 7
        %v822 = vsub.s32 0, %v821
        %v823 = vrot.slane %v818, %v822
        %v829 = vunpack.c.l.b16 %v813
        %v830 = vunpack.c.l.b16 %v814
        %v831 = vunpack.c.l.b16 %v815
        %v832 = vunpack.c.l.b16 %v816
        %v833 = vpack.c.b16 %v830, %v829
        %v834 = vpack.c.b16 %v832, %v831
        %vm837 = vcmask 261120
        %v839 = vsel %vm837, %v809, 0
        %841 = vmatprep.subr.bf16.mxu0 0
        %842 = vmatpush1.bf16.msra.mxu0 %v833
        %843 = vmatprep.subr.bf16.mxu0 0
        %844 = vmatpush1.bf16.msra.mxu0 %v834
        %845 = vmatprep.subr.bf16.mxu0 0
        %846 = vmatpush1.bf16.msra.mxu0 0
        %847 = vmatprep.subr.bf16.mxu0 0
        %848 = vmatpush1.bf16.msra.mxu0 0
        %849 = vmatprep.subr.bf16.mxu0 0
        %850 = vmatpush1.bf16.msra.mxu0 0
        %851 = vmatprep.subr.bf16.mxu0 0
        %852 = vmatpush1.bf16.msra.mxu0 0
        %853 = vmatprep.subr.bf16.mxu0 0
        %854 = vmatpush1.bf16.msra.mxu0 0
        %855 = vmatprep.subr.bf16.mxu0 0
        %856 = vmatpush1.bf16.msra.mxu0 0
        %857 = vmatprep.subr.bf16.mxu0 0
        %858 = vmatpush1.bf16.msra.mxu0 0
        %859 = vmatprep.subr.bf16.mxu0 0
        %860 = vmatpush1.bf16.msra.mxu0 0
        %861 = vmatprep.subr.bf16.mxu0 0
        %862 = vmatpush1.bf16.msra.mxu0 0
        %863 = vmatprep.subr.bf16.mxu0 0
        %864 = vmatpush1.bf16.msra.mxu0 0
        %865 = vmatprep.subr.bf16.mxu0 0
        %866 = vmatpush1.bf16.msra.mxu0 0
        %867 = vmatprep.subr.bf16.mxu0 0
        %868 = vmatpush1.bf16.msra.mxu0 0
        %869 = vmatprep.subr.bf16.mxu0 0
        %870 = vmatpush1.bf16.msra.mxu0 0
        %871 = vmatprep.subr.bf16.mxu0 0
        %872 = vmatpush1.bf16.msra.mxu0 0
        %873 = vmatprep.mubr.bf16.mxu0 0
        %874 = vmatmul.mubr.bf16.gmra.mrb[0].mxu0 %v839
        %v875 = vpop.f32.mrb[0].mxu0
        %v876 = vadd.f32 %v823, %v875
        %v877 = vpop.f32.mrb[0].mxu0
        %v878 = vpop.f32.mrb[0].mxu0
        %v879 = vpop.f32.mrb[0].mxu0
        %880 = vdwg.mxu0
        %882 = vrot.lane.b32.xlu0 %v876, 120
        %v883 = vpop.permute.xlu0 %882
        %885 = vrot.lane.b32.xlu0 %v876, 112
        %v886 = vpop.permute.xlu0 %885
        %888 = vrot.lane.b32.xlu0 %v876, 104
        %v889 = vpop.permute.xlu0 %888
        %891 = vrot.lane.b32.xlu0 %v876, 96
        %v892 = vpop.permute.xlu0 %891
        %894 = vrot.lane.b32.xlu0 %v876, 88
        %v895 = vpop.permute.xlu0 %894
        %897 = vrot.lane.b32.xlu0 %v876, 80
        %v898 = vpop.permute.xlu0 %897
        %900 = vrot.lane.b32.xlu0 %v876, 72
        %v901 = vpop.permute.xlu0 %900
        %903 = vrot.lane.b32.xlu0 %v876, 64
        %v904 = vpop.permute.xlu0 %903
        %906 = vrot.lane.b32.xlu0 %v876, 56
        %v907 = vpop.permute.xlu0 %906
        %909 = vrot.lane.b32.xlu0 %v876, 48
        %v910 = vpop.permute.xlu0 %909
        %912 = vrot.lane.b32.xlu0 %v876, 40
        %v913 = vpop.permute.xlu0 %912
        %v915 = vcombine.low %v876, %v886
        %v916 = vcombine.high %v876, %v886
        %v918 = vunpack.c.l.s4 1983009808
        %v919 = vunpack.c.0.s8 %v918
        %v920 = vlaneseq
        %v921 = vshrl.u32 %v920, 7
        %v922 = vsub.s32 %v919, %v921
        %v923 = vrot.slane %v915, %v922
        %v925 = vunpack.c.l.s4 1983009808
        %v926 = vunpack.c.0.s8 %v925
        %v927 = vlaneseq
        %v928 = vshrl.u32 %v927, 7
        %v929 = vsub.s32 %v926, %v928
        %v930 = vrot.slane %v916, %v929
        %v931 = vcombine.low %v883, %v889
        %v932 = vcombine.high %v883, %v889
        %v934 = vunpack.c.l.s4 1983009808
        %v935 = vunpack.c.0.s8 %v934
        %v936 = vlaneseq
        %v937 = vshrl.u32 %v936, 7
        %v938 = vsub.s32 %v935, %v937
        %v939 = vrot.slane %v931, %v938
        %v941 = vunpack.c.l.s4 1983009808
        %v942 = vunpack.c.0.s8 %v941
        %v943 = vlaneseq
        %v944 = vshrl.u32 %v943, 7
        %v945 = vsub.s32 %v942, %v944
        %v946 = vrot.slane %v932, %v945
        %v947 = vcombine.low %v892, %v898
        %v948 = vcombine.high %v892, %v898
        %v950 = vunpack.c.l.s4 1983009808
        %v951 = vunpack.c.0.s8 %v950
        %v952 = vlaneseq
        %v953 = vshrl.u32 %v952, 7
        %v954 = vsub.s32 %v951, %v953
        %v955 = vrot.slane %v947, %v954
        %v957 = vunpack.c.l.s4 1983009808
        %v958 = vunpack.c.0.s8 %v957
        %v959 = vlaneseq
        %v960 = vshrl.u32 %v959, 7
        %v961 = vsub.s32 %v958, %v960
        %v962 = vrot.slane %v948, %v961
        %v963 = vcombine.low %v895, %v901
        %v964 = vcombine.high %v895, %v901
        %v966 = vunpack.c.l.s4 1983009808
        %v967 = vunpack.c.0.s8 %v966
        %v968 = vlaneseq
        %v969 = vshrl.u32 %v968, 7
        %v970 = vsub.s32 %v967, %v969
        %v971 = vrot.slane %v963, %v970
        %v973 = vunpack.c.l.s4 1983009808
        %v974 = vunpack.c.0.s8 %v973
        %v975 = vlaneseq
        %v976 = vshrl.u32 %v975, 7
        %v977 = vsub.s32 %v974, %v976
        %v978 = vrot.slane %v964, %v977
        %v979 = vcombine.low %v923, %v939
        %v980 = vcombine.high %v923, %v939
        %v982 = vunpack.c.l.s4 1934713408
        %v983 = vunpack.c.0.s8 %v982
        %v984 = vlaneseq
        %v985 = vshrl.u32 %v984, 7
        %v986 = vsub.s32 %v983, %v985
        %v987 = vrot.slane %v979, %v986
        %v989 = vunpack.c.l.s4 1934713408
        %v990 = vunpack.c.0.s8 %v989
        %v991 = vlaneseq
        %v992 = vshrl.u32 %v991, 7
        %v993 = vsub.s32 %v990, %v992
        %v994 = vrot.slane %v980, %v993
        %v995 = vcombine.low %v930, %v946
        %v996 = vcombine.high %v930, %v946
        %v998 = vunpack.c.l.s4 1934713408
        %v999 = vunpack.c.0.s8 %v998
        %v1000 = vlaneseq
        %v1001 = vshrl.u32 %v1000, 7
        %v1002 = vsub.s32 %v999, %v1001
        %v1003 = vrot.slane %v995, %v1002
        %v1005 = vunpack.c.l.s4 1934713408
        %v1006 = vunpack.c.0.s8 %v1005
        %v1007 = vlaneseq
        %v1008 = vshrl.u32 %v1007, 7
        %v1009 = vsub.s32 %v1006, %v1008
        %v1010 = vrot.slane %v996, %v1009
        %v1011 = vcombine.low %v955, %v971
        %v1012 = vcombine.high %v955, %v971
        %v1014 = vunpack.c.l.s4 1934713408
        %v1015 = vunpack.c.0.s8 %v1014
        %v1016 = vlaneseq
        %v1017 = vshrl.u32 %v1016, 7
        %v1018 = vsub.s32 %v1015, %v1017
        %v1019 = vrot.slane %v1011, %v1018
        %v1021 = vunpack.c.l.s4 1934713408
        %v1022 = vunpack.c.0.s8 %v1021
        %v1023 = vlaneseq
        %v1024 = vshrl.u32 %v1023, 7
        %v1025 = vsub.s32 %v1022, %v1024
        %v1026 = vrot.slane %v1012, %v1025
        %v1027 = vcombine.low %v962, %v978
        %v1028 = vcombine.high %v962, %v978
        %v1030 = vunpack.c.l.s4 1934713408
        %v1031 = vunpack.c.0.s8 %v1030
        %v1032 = vlaneseq
        %v1033 = vshrl.u32 %v1032, 7
        %v1034 = vsub.s32 %v1031, %v1033
        %v1035 = vrot.slane %v1027, %v1034
        %v1037 = vunpack.c.l.s4 1934713408
        %v1038 = vunpack.c.0.s8 %v1037
        %v1039 = vlaneseq
        %v1040 = vshrl.u32 %v1039, 7
        %v1041 = vsub.s32 %v1038, %v1040
        %v1042 = vrot.slane %v1028, %v1041
        %v1043 = vcombine.low %v987, %v1019
        %v1044 = vcombine.high %v987, %v1019
        %v1045 = vcombine.low %v994, %v1026
        %v1046 = vcombine.high %v994, %v1026
        %v1047 = vcombine.low %v1003, %v1035
        %v1048 = vcombine.high %v1003, %v1035
        %v1049 = vcombine.low %v1010, %v1042
        %v1050 = vcombine.high %v1010, %v1042
        %v1051 = vcombine.low %v904, %v910
        %v1052 = vcombine.high %v904, %v910
        %v1054 = vunpack.c.l.s4 1983009808
        %v1055 = vunpack.c.0.s8 %v1054
        %v1056 = vlaneseq
        %v1057 = vshrl.u32 %v1056, 7
        %v1058 = vsub.s32 %v1055, %v1057
        %v1059 = vrot.slane %v1051, %v1058
        %v1061 = vunpack.c.l.s4 1983009808
        %v1062 = vunpack.c.0.s8 %v1061
        %v1063 = vlaneseq
        %v1064 = vshrl.u32 %v1063, 7
        %v1065 = vsub.s32 %v1062, %v1064
        %v1066 = vrot.slane %v1052, %v1065
        %v1067 = vcombine.low %v907, %v913
        %v1068 = vcombine.high %v907, %v913
        %v1070 = vunpack.c.l.s4 1983009808
        %v1071 = vunpack.c.0.s8 %v1070
        %v1072 = vlaneseq
        %v1073 = vshrl.u32 %v1072, 7
        %v1074 = vsub.s32 %v1071, %v1073
        %v1075 = vrot.slane %v1067, %v1074
        %v1077 = vunpack.c.l.s4 1983009808
        %v1078 = vunpack.c.0.s8 %v1077
        %v1079 = vlaneseq
        %v1080 = vshrl.u32 %v1079, 7
        %v1081 = vsub.s32 %v1078, %v1080
        %v1082 = vrot.slane %v1068, %v1081
        %v1083 = vcombine.low %v1059, %v1075
        %v1084 = vcombine.high %v1059, %v1075
        %v1086 = vunpack.c.l.s4 1934713408
        %v1087 = vunpack.c.0.s8 %v1086
        %v1088 = vlaneseq
        %v1089 = vshrl.u32 %v1088, 7
        %v1090 = vsub.s32 %v1087, %v1089
        %v1091 = vrot.slane %v1083, %v1090
        %v1093 = vunpack.c.l.s4 1934713408
        %v1094 = vunpack.c.0.s8 %v1093
        %v1095 = vlaneseq
        %v1096 = vshrl.u32 %v1095, 7
        %v1097 = vsub.s32 %v1094, %v1096
        %v1098 = vrot.slane %v1084, %v1097
        %v1099 = vcombine.low %v1066, %v1082
        %v1100 = vcombine.high %v1066, %v1082
        %v1102 = vunpack.c.l.s4 1934713408
        %v1103 = vunpack.c.0.s8 %v1102
        %v1104 = vlaneseq
        %v1105 = vshrl.u32 %v1104, 7
        %v1106 = vsub.s32 %v1103, %v1105
        %v1107 = vrot.slane %v1099, %v1106
        %v1109 = vunpack.c.l.s4 1934713408
        %v1110 = vunpack.c.0.s8 %v1109
        %v1111 = vlaneseq
        %v1112 = vshrl.u32 %v1111, 7
        %v1113 = vsub.s32 %v1110, %v1112
        %v1114 = vrot.slane %v1100, %v1113
        %v1115 = vcombine.high %v1091, 0.0
        %v1116 = vcombine.high %v1098, 0.0
        %v1117 = vcombine.high %v1107, 0.0
        %v1118 = vcombine.high %v1114, 0.0
        %v1119 = vcombine.low %v1043, %v1045
        %v1120 = vcombine.high %v1043, %v1045
        %v1122 = vunpack.c.l.s4 1983009808
        %v1123 = vunpack.c.0.s8 %v1122
        %v1124 = vlaneseq
        %v1125 = vshrl.u32 %v1124, 7
        %v1126 = vsub.s32 %v1123, %v1125
        %v1127 = vrot.slane %v1119, %v1126
        %v1129 = vunpack.c.l.s4 1983009808
        %v1130 = vunpack.c.0.s8 %v1129
        %v1131 = vlaneseq
        %v1132 = vshrl.u32 %v1131, 7
        %v1133 = vsub.s32 %v1130, %v1132
        %v1134 = vrot.slane %v1120, %v1133
        %v1135 = vcombine.low %v1044, %v1046
        %v1136 = vcombine.high %v1044, %v1046
        %v1138 = vunpack.c.l.s4 1983009808
        %v1139 = vunpack.c.0.s8 %v1138
        %v1140 = vlaneseq
        %v1141 = vshrl.u32 %v1140, 7
        %v1142 = vsub.s32 %v1139, %v1141
        %v1143 = vrot.slane %v1135, %v1142
        %v1145 = vunpack.c.l.s4 1983009808
        %v1146 = vunpack.c.0.s8 %v1145
        %v1147 = vlaneseq
        %v1148 = vshrl.u32 %v1147, 7
        %v1149 = vsub.s32 %v1146, %v1148
        %v1150 = vrot.slane %v1136, %v1149
        %v1151 = vcombine.low %v1047, %v1049
        %v1152 = vcombine.high %v1047, %v1049
        %v1154 = vunpack.c.l.s4 1983009808
        %v1155 = vunpack.c.0.s8 %v1154
        %v1156 = vlaneseq
        %v1157 = vshrl.u32 %v1156, 7
        %v1158 = vsub.s32 %v1155, %v1157
        %v1159 = vrot.slane %v1151, %v1158
        %v1161 = vunpack.c.l.s4 1983009808
        %v1162 = vunpack.c.0.s8 %v1161
        %v1163 = vlaneseq
        %v1164 = vshrl.u32 %v1163, 7
        %v1165 = vsub.s32 %v1162, %v1164
        %v1166 = vrot.slane %v1152, %v1165
        %v1167 = vcombine.low %v1048, %v1050
        %v1168 = vcombine.high %v1048, %v1050
        %v1170 = vunpack.c.l.s4 1983009808
        %v1171 = vunpack.c.0.s8 %v1170
        %v1172 = vlaneseq
        %v1173 = vshrl.u32 %v1172, 7
        %v1174 = vsub.s32 %v1171, %v1173
        %v1175 = vrot.slane %v1167, %v1174
        %v1177 = vunpack.c.l.s4 1983009808
        %v1178 = vunpack.c.0.s8 %v1177
        %v1179 = vlaneseq
        %v1180 = vshrl.u32 %v1179, 7
        %v1181 = vsub.s32 %v1178, %v1180
        %v1182 = vrot.slane %v1168, %v1181
        %v1183 = vcombine.low %v1127, %v1143
        %v1184 = vcombine.high %v1127, %v1143
        %v1186 = vunpack.c.l.s4 1934713408
        %v1187 = vunpack.c.0.s8 %v1186
        %v1188 = vlaneseq
        %v1189 = vshrl.u32 %v1188, 7
        %v1190 = vsub.s32 %v1187, %v1189
        %v1191 = vrot.slane %v1183, %v1190
        %v1193 = vunpack.c.l.s4 1934713408
        %v1194 = vunpack.c.0.s8 %v1193
        %v1195 = vlaneseq
        %v1196 = vshrl.u32 %v1195, 7
        %v1197 = vsub.s32 %v1194, %v1196
        %v1198 = vrot.slane %v1184, %v1197
        %v1199 = vcombine.low %v1134, %v1150
        %v1200 = vcombine.high %v1134, %v1150
        %v1202 = vunpack.c.l.s4 1934713408
        %v1203 = vunpack.c.0.s8 %v1202
        %v1204 = vlaneseq
        %v1205 = vshrl.u32 %v1204, 7
        %v1206 = vsub.s32 %v1203, %v1205
        %v1207 = vrot.slane %v1199, %v1206
        %v1209 = vunpack.c.l.s4 1934713408
        %v1210 = vunpack.c.0.s8 %v1209
        %v1211 = vlaneseq
        %v1212 = vshrl.u32 %v1211, 7
        %v1213 = vsub.s32 %v1210, %v1212
        %v1214 = vrot.slane %v1200, %v1213
        %v1215 = vcombine.low %v1159, %v1175
        %v1216 = vcombine.high %v1159, %v1175
        %v1218 = vunpack.c.l.s4 1934713408
        %v1219 = vunpack.c.0.s8 %v1218
        %v1220 = vlaneseq
        %v1221 = vshrl.u32 %v1220, 7
        %v1222 = vsub.s32 %v1219, %v1221
        %v1223 = vrot.slane %v1215, %v1222
        %v1225 = vunpack.c.l.s4 1934713408
        %v1226 = vunpack.c.0.s8 %v1225
        %v1227 = vlaneseq
        %v1228 = vshrl.u32 %v1227, 7
        %v1229 = vsub.s32 %v1226, %v1228
        %v1230 = vrot.slane %v1216, %v1229
        %v1231 = vcombine.low %v1166, %v1182
        %v1232 = vcombine.high %v1166, %v1182
        %v1234 = vunpack.c.l.s4 1934713408
        %v1235 = vunpack.c.0.s8 %v1234
        %v1236 = vlaneseq
        %v1237 = vshrl.u32 %v1236, 7
        %v1238 = vsub.s32 %v1235, %v1237
        %v1239 = vrot.slane %v1231, %v1238
        %v1241 = vunpack.c.l.s4 1934713408
        %v1242 = vunpack.c.0.s8 %v1241
        %v1243 = vlaneseq
        %v1244 = vshrl.u32 %v1243, 7
        %v1245 = vsub.s32 %v1242, %v1244
        %v1246 = vrot.slane %v1232, %v1245
        %v1247 = vcombine.low %v1191, %v1223
        %v1248 = vcombine.high %v1191, %v1223
        %v1249 = vcombine.low %v1198, %v1230
        %v1250 = vcombine.high %v1198, %v1230
        %v1251 = vcombine.low %v1207, %v1239
        %v1252 = vcombine.high %v1207, %v1239
        %v1253 = vcombine.low %v1214, %v1246
        %v1254 = vcombine.high %v1214, %v1246
        %v1255 = vcombine.low %v1091, %v1098
        %v1257 = vunpack.c.l.s4 1983009808
        %v1258 = vunpack.c.0.s8 %v1257
        %v1259 = vlaneseq
        %v1260 = vshrl.u32 %v1259, 7
        %v1261 = vsub.s32 %v1258, %v1260
        %v1262 = vrot.slane %v1255, %v1261
        %v1263 = vcombine.low %v1115, %v1116
        %v1265 = vunpack.c.l.s4 1983009808
        %v1266 = vunpack.c.0.s8 %v1265
        %v1267 = vlaneseq
        %v1268 = vshrl.u32 %v1267, 7
        %v1269 = vsub.s32 %v1266, %v1268
        %v1270 = vrot.slane %v1263, %v1269
        %v1271 = vcombine.low %v1107, %v1114
        %v1273 = vunpack.c.l.s4 1983009808
        %v1274 = vunpack.c.0.s8 %v1273
        %v1275 = vlaneseq
        %v1276 = vshrl.u32 %v1275, 7
        %v1277 = vsub.s32 %v1274, %v1276
        %v1278 = vrot.slane %v1271, %v1277
        %v1279 = vcombine.low %v1117, %v1118
        %v1281 = vunpack.c.l.s4 1983009808
        %v1282 = vunpack.c.0.s8 %v1281
        %v1283 = vlaneseq
        %v1284 = vshrl.u32 %v1283, 7
        %v1285 = vsub.s32 %v1282, %v1284
        %v1286 = vrot.slane %v1279, %v1285
        %v1287 = vcombine.low %v1262, %v1270
        %v1288 = vcombine.high %v1262, %v1270
        %v1290 = vunpack.c.l.s4 1934713408
        %v1291 = vunpack.c.0.s8 %v1290
        %v1292 = vlaneseq
        %v1293 = vshrl.u32 %v1292, 7
        %v1294 = vsub.s32 %v1291, %v1293
        %v1295 = vrot.slane %v1287, %v1294
        %v1297 = vunpack.c.l.s4 1934713408
        %v1298 = vunpack.c.0.s8 %v1297
        %v1299 = vlaneseq
        %v1300 = vshrl.u32 %v1299, 7
        %v1301 = vsub.s32 %v1298, %v1300
        %v1302 = vrot.slane %v1288, %v1301
        %v1303 = vcombine.low %v1278, %v1286
        %v1304 = vcombine.high %v1278, %v1286
        %v1306 = vunpack.c.l.s4 1934713408
        %v1307 = vunpack.c.0.s8 %v1306
        %v1308 = vlaneseq
        %v1309 = vshrl.u32 %v1308, 7
        %v1310 = vsub.s32 %v1307, %v1309
        %v1311 = vrot.slane %v1303, %v1310
        %v1313 = vunpack.c.l.s4 1934713408
        %v1314 = vunpack.c.0.s8 %v1313
        %v1315 = vlaneseq
        %v1316 = vshrl.u32 %v1315, 7
        %v1317 = vsub.s32 %v1314, %v1316
        %v1318 = vrot.slane %v1304, %v1317
        %v1319 = vcombine.low %v1295, %v1311
        %v1320 = vcombine.high %v1295, %v1311
        %v1321 = vcombine.low %v1302, %v1318
        %v1322 = vcombine.high %v1302, %v1318
        %v1323 = vpack.c.bf16 %v1247, %v1247
        %v1324 = vpack.c.bf16 %v1248, %v1248
        %v1325 = vpack.c.bf16 %v1249, %v1249
        %v1326 = vpack.c.bf16 %v1250, %v1250
        %v1327 = vpack.c.bf16 %v1251, %v1251
        %v1328 = vpack.c.bf16 %v1252, %v1252
        %v1329 = vpack.c.bf16 %v1253, %v1253
        %v1330 = vpack.c.bf16 %v1254, %v1254
        %v1331 = vpack.c.bf16 %v1319, %v1319
        %v1332 = vpack.c.bf16 %v1320, %v1320
        %v1333 = vpack.c.bf16 %v1321, %v1321
        %v1334 = vpack.c.bf16 %v1322, %v1322
        %vm1335 = vcmask 64512
        %v1337 = vsel %vm1335, %v1323, 0
        %v1340 = vsel %vm1335, %v1327, 0
        %1342 = vmatprep.subr.bf16.mxu0 0
        %1343 = vmatpush1.bf16.xpose.msra.mxu0 %v1340
        %1344 = vmatprep.subr.bf16.mxu0 0
        %1345 = vmatpush1.bf16.xpose.msra.mxu0 0
        %1346 = vmatprep.subr.bf16.mxu0 0
        %1347 = vmatpush1.bf16.xpose.msra.mxu0 0
        %1348 = vmatprep.subr.bf16.mxu0 0
        %1349 = vmatpush1.bf16.xpose.msra.mxu0 0
        %1350 = vmatprep.subr.bf16.mxu0 0
        %1351 = vmatpush1.bf16.xpose.msra.mxu0 0
        %1352 = vmatprep.subr.bf16.mxu0 0
        %1353 = vmatpush1.bf16.xpose.msra.mxu0 0
        %1354 = vmatprep.subr.bf16.mxu0 0
        %1355 = vmatpush1.bf16.xpose.msra.mxu0 0
        %1356 = vmatprep.subr.bf16.mxu0 0
        %1357 = vmatpush1.bf16.xpose.msra.mxu0 0
        %1358 = vmatprep.subr.bf16.mxu0 0
        %1359 = vmatpush1.bf16.xpose.msra.mxu0 0
        %1360 = vmatprep.subr.bf16.mxu0 0
        %1361 = vmatpush1.bf16.xpose.msra.mxu0 0
        %1362 = vmatprep.subr.bf16.mxu0 0
        %1363 = vmatpush1.bf16.xpose.msra.mxu0 0
        %1364 = vmatprep.subr.bf16.mxu0 0
        %1365 = vmatpush1.bf16.xpose.msra.mxu0 0
        %1366 = vmatprep.subr.bf16.mxu0 0
        %1367 = vmatpush1.bf16.xpose.msra.mxu0 0
        %1368 = vmatprep.subr.bf16.mxu0 0
        %1369 = vmatpush1.bf16.xpose.msra.mxu0 0
        %1370 = vmatprep.subr.bf16.mxu0 0
        %1371 = vmatpush1.bf16.xpose.msra.mxu0 0
        %1372 = vmatprep.subr.bf16.mxu0 0
        %1373 = vmatpush1.bf16.xpose.msra.mxu0 0
        %1374 = vmatprep.mubr.bf16.mxu0 0
        %1375 = vmatmul.mubr.bf16.gmra.mrb[0].mxu0 %v1337
        %v1376 = vpop.f32.mrb[0].mxu0
        %v1377 = vadd.f32 0.0, %v1376
        %v1378 = vpop.f32.mrb[0].mxu0
        %v1379 = vpop.f32.mrb[0].mxu0
        %v1380 = vpop.f32.mrb[0].mxu0
        %1381 = vdwg.mxu0
        %v1383 = vsel %vm1335, %v1324, 0
        %v1386 = vsel %vm1335, %v1328, 0
        %1388 = vmatprep.subr.bf16.mxu0 0
        %1389 = vmatpush1.bf16.xpose.msra.mxu0 %v1386
        %1390 = vmatprep.subr.bf16.mxu0 0
        %1391 = vmatpush1.bf16.xpose.msra.mxu0 0
        %1392 = vmatprep.subr.bf16.mxu0 0
        %1393 = vmatpush1.bf16.xpose.msra.mxu0 0
        %1394 = vmatprep.subr.bf16.mxu0 0
        %1395 = vmatpush1.bf16.xpose.msra.mxu0 0
        %1396 = vmatprep.subr.bf16.mxu0 0
        %1397 = vmatpush1.bf16.xpose.msra.mxu0 0
        %1398 = vmatprep.subr.bf16.mxu0 0
        %1399 = vmatpush1.bf16.xpose.msra.mxu0 0
        %1400 = vmatprep.subr.bf16.mxu0 0
        %1401 = vmatpush1.bf16.xpose.msra.mxu0 0
        %1402 = vmatprep.subr.bf16.mxu0 0
        %1403 = vmatpush1.bf16.xpose.msra.mxu0 0
        %1404 = vmatprep.subr.bf16.mxu0 0
        %1405 = vmatpush1.bf16.xpose.msra.mxu0 0
        %1406 = vmatprep.subr.bf16.mxu0 0
        %1407 = vmatpush1.bf16.xpose.msra.mxu0 0
        %1408 = vmatprep.subr.bf16.mxu0 0
        %1409 = vmatpush1.bf16.xpose.msra.mxu0 0
        %1410 = vmatprep.subr.bf16.mxu0 0
        %1411 = vmatpush1.bf16.xpose.msra.mxu0 0
        %1412 = vmatprep.subr.bf16.mxu0 0
        %1413 = vmatpush1.bf16.xpose.msra.mxu0 0
        %1414 = vmatprep.subr.bf16.mxu0 0
        %1415 = vmatpush1.bf16.xpose.msra.mxu0 0
        %1416 = vmatprep.subr.bf16.mxu0 0
        %1417 = vmatpush1.bf16.xpose.msra.mxu0 0
        %1418 = vmatprep.subr.bf16.mxu0 0
        %1419 = vmatpush1.bf16.xpose.msra.mxu0 0
        %1420 = vmatprep.mubr.bf16.mxu0 0
        %1421 = vmatmul.mubr.bf16.gmra.mrb[0].mxu0 %v1383
        %v1422 = vpop.f32.mrb[0].mxu0
        %v1423 = vadd.f32 0.0, %v1422
        %v1424 = vpop.f32.mrb[0].mxu0
        %v1425 = vpop.f32.mrb[0].mxu0
        %v1426 = vpop.f32.mrb[0].mxu0
        %1427 = vdwg.mxu0
        %v1429 = vsel %vm1335, %v1325, 0
        %v1432 = vsel %vm1335, %v1329, 0
        %1434 = vmatprep.subr.bf16.mxu0 0
        %1435 = vmatpush1.bf16.xpose.msra.mxu0 %v1432
        %1436 = vmatprep.subr.bf16.mxu0 0
        %1437 = vmatpush1.bf16.xpose.msra.mxu0 0
        %1438 = vmatprep.subr.bf16.mxu0 0
        %1439 = vmatpush1.bf16.xpose.msra.mxu0 0
        %1440 = vmatprep.subr.bf16.mxu0 0
        %1441 = vmatpush1.bf16.xpose.msra.mxu0 0
        %1442 = vmatprep.subr.bf16.mxu0 0
        %1443 = vmatpush1.bf16.xpose.msra.mxu0 0
        %1444 = vmatprep.subr.bf16.mxu0 0
        %1445 = vmatpush1.bf16.xpose.msra.mxu0 0
        %1446 = vmatprep.subr.bf16.mxu0 0
        %1447 = vmatpush1.bf16.xpose.msra.mxu0 0
        %1448 = vmatprep.subr.bf16.mxu0 0
        %1449 = vmatpush1.bf16.xpose.msra.mxu0 0
        %1450 = vmatprep.subr.bf16.mxu0 0
        %1451 = vmatpush1.bf16.xpose.msra.mxu0 0
        %1452 = vmatprep.subr.bf16.mxu0 0
        %1453 = vmatpush1.bf16.xpose.msra.mxu0 0
        %1454 = vmatprep.subr.bf16.mxu0 0
        %1455 = vmatpush1.bf16.xpose.msra.mxu0 0
        %1456 = vmatprep.subr.bf16.mxu0 0
        %1457 = vmatpush1.bf16.xpose.msra.mxu0 0
        %1458 = vmatprep.subr.bf16.mxu0 0
        %1459 = vmatpush1.bf16.xpose.msra.mxu0 0
        %1460 = vmatprep.subr.bf16.mxu0 0
        %1461 = vmatpush1.bf16.xpose.msra.mxu0 0
        %1462 = vmatprep.subr.bf16.mxu0 0
        %1463 = vmatpush1.bf16.xpose.msra.mxu0 0
        %1464 = vmatprep.subr.bf16.mxu0 0
        %1465 = vmatpush1.bf16.xpose.msra.mxu0 0
        %1466 = vmatprep.mubr.bf16.mxu0 0
        %1467 = vmatmul.mubr.bf16.gmra.mrb[0].mxu0 %v1429
        %v1468 = vpop.f32.mrb[0].mxu0
        %v1469 = vadd.f32 0.0, %v1468
        %v1470 = vpop.f32.mrb[0].mxu0
        %v1471 = vpop.f32.mrb[0].mxu0
        %v1472 = vpop.f32.mrb[0].mxu0
        %1473 = vdwg.mxu0
        %v1475 = vsel %vm1335, %v1326, 0
        %v1478 = vsel %vm1335, %v1330, 0
        %1480 = vmatprep.subr.bf16.mxu0 0
        %1481 = vmatpush1.bf16.xpose.msra.mxu0 %v1478
        %1482 = vmatprep.subr.bf16.mxu0 0
        %1483 = vmatpush1.bf16.xpose.msra.mxu0 0
        %1484 = vmatprep.subr.bf16.mxu0 0
        %1485 = vmatpush1.bf16.xpose.msra.mxu0 0
        %1486 = vmatprep.subr.bf16.mxu0 0
        %1487 = vmatpush1.bf16.xpose.msra.mxu0 0
        %1488 = vmatprep.subr.bf16.mxu0 0
        %1489 = vmatpush1.bf16.xpose.msra.mxu0 0
        %1490 = vmatprep.subr.bf16.mxu0 0
        %1491 = vmatpush1.bf16.xpose.msra.mxu0 0
        %1492 = vmatprep.subr.bf16.mxu0 0
        %1493 = vmatpush1.bf16.xpose.msra.mxu0 0
        %1494 = vmatprep.subr.bf16.mxu0 0
        %1495 = vmatpush1.bf16.xpose.msra.mxu0 0
        %1496 = vmatprep.subr.bf16.mxu0 0
        %1497 = vmatpush1.bf16.xpose.msra.mxu0 0
        %1498 = vmatprep.subr.bf16.mxu0 0
        %1499 = vmatpush1.bf16.xpose.msra.mxu0 0
        %1500 = vmatprep.subr.bf16.mxu0 0
        %1501 = vmatpush1.bf16.xpose.msra.mxu0 0
        %1502 = vmatprep.subr.bf16.mxu0 0
        %1503 = vmatpush1.bf16.xpose.msra.mxu0 0
        %1504 = vmatprep.subr.bf16.mxu0 0
        %1505 = vmatpush1.bf16.xpose.msra.mxu0 0
        %1506 = vmatprep.subr.bf16.mxu0 0
        %1507 = vmatpush1.bf16.xpose.msra.mxu0 0
        %1508 = vmatprep.subr.bf16.mxu0 0
        %1509 = vmatpush1.bf16.xpose.msra.mxu0 0
        %1510 = vmatprep.subr.bf16.mxu0 0
        %1511 = vmatpush1.bf16.xpose.msra.mxu0 0
        %1512 = vmatprep.mubr.bf16.mxu0 0
        %1513 = vmatmul.mubr.bf16.gmra.mrb[0].mxu0 %v1475
        %v1514 = vpop.f32.mrb[0].mxu0
        %v1515 = vadd.f32 0.0, %v1514
        %v1516 = vpop.f32.mrb[0].mxu0
        %v1517 = vpop.f32.mrb[0].mxu0
        %v1518 = vpop.f32.mrb[0].mxu0
        %1519 = vdwg.mxu0
        %v1520 = vmul.f32 %v1377, 0.35355338
        %v1521 = vmul.f32 %v1423, 0.35355338
        %v1522 = vmul.f32 %v1469, 0.35355338
        %v1523 = vmul.f32 %v1515, 0.35355338
        %v1524 = vadd.f32 %v1520, %v808
        %v1525 = vadd.f32 %v1521, %v808
        %v1526 = vadd.f32 %v1522, %v808
        %v1527 = vadd.f32 %v1523, %v808
        %v1528 = vsel %vm1335, %v1524, -inf
        %1529 = vmax.xlane.f32.xlu0 %v1528
        %v1530 = vpop.xlane.xlu0 %1529
        %v1531 = vsel %vm1335, %v1525, -inf
        %1532 = vmax.xlane.f32.xlu0 %v1531
        %v1533 = vpop.xlane.xlu0 %1532
        %v1534 = vsel %vm1335, %v1526, -inf
        %1535 = vmax.xlane.f32.xlu0 %v1534
        %v1536 = vpop.xlane.xlu0 %1535
        %v1537 = vsel %vm1335, %v1527, -inf
        %1538 = vmax.xlane.f32.xlu0 %v1537
        %v1539 = vpop.xlane.xlu0 %1538
        %v1540 = vsub.f32 %v1524, %v1530
        %v1541 = vsub.f32 %v1525, %v1533
        %v1542 = vsub.f32 %v1526, %v1536
        %v1543 = vsub.f32 %v1527, %v1539
        %v1544 = vmul.f32 %v1540, 1.442695
        %v1545 = vpow.pop %v1544
        %v1546 = vmul.f32 %v1541, 1.442695
        %v1547 = vpow.pop %v1546
        %v1548 = vmul.f32 %v1542, 1.442695
        %v1549 = vpow.pop %v1548
        %v1550 = vmul.f32 %v1543, 1.442695
        %v1551 = vpow.pop %v1550
        %v1552 = vsel %vm1335, %v1545, 0.0
        %1553 = vadd.xlane.f32.xlu0 %v1552
        %v1554 = vpop.xlane.xlu0 %1553
        %v1555 = vsel %vm1335, %v1547, 0.0
        %1556 = vadd.xlane.f32.xlu0 %v1555
        %v1557 = vpop.xlane.xlu0 %1556
        %v1558 = vsel %vm1335, %v1549, 0.0
        %1559 = vadd.xlane.f32.xlu0 %v1558
        %v1560 = vpop.xlane.xlu0 %1559
        %v1561 = vsel %vm1335, %v1551, 0.0
        %1562 = vadd.xlane.f32.xlu0 %v1561
        %v1563 = vpop.xlane.xlu0 %1562
        %v1564 = vrcp.pop %v1554
        %v1565 = vmul.f32 %v1545, %v1564
        %v1566 = vrcp.pop %v1557
        %v1567 = vmul.f32 %v1547, %v1566
        %v1568 = vrcp.pop %v1560
        %v1569 = vmul.f32 %v1549, %v1568
        %v1570 = vrcp.pop %v1563
        %v1571 = vmul.f32 %v1551, %v1570
        %v1572 = vpack.c.bf16 %v1565, %v1565
        %v1573 = vpack.c.bf16 %v1567, %v1567
        %v1574 = vpack.c.bf16 %v1569, %v1569
        %v1575 = vpack.c.bf16 %v1571, %v1571
        %v1577 = vsel %vm1335, %v1572, 0
        %vm1579 = vcmask 1043456
        %v1581 = vsel %vm1579, %v1331, 0
        %1583 = vmatprep.subr.bf16.mxu0 0
        %1584 = vmatpush1.bf16.msra.mxu0 %v1581
        %1585 = vmatprep.subr.bf16.mxu0 0
        %1586 = vmatpush1.bf16.msra.mxu0 0
        %1587 = vmatprep.subr.bf16.mxu0 0
        %1588 = vmatpush1.bf16.msra.mxu0 0
        %1589 = vmatprep.subr.bf16.mxu0 0
        %1590 = vmatpush1.bf16.msra.mxu0 0
        %1591 = vmatprep.subr.bf16.mxu0 0
        %1592 = vmatpush1.bf16.msra.mxu0 0
        %1593 = vmatprep.subr.bf16.mxu0 0
        %1594 = vmatpush1.bf16.msra.mxu0 0
        %1595 = vmatprep.subr.bf16.mxu0 0
        %1596 = vmatpush1.bf16.msra.mxu0 0
        %1597 = vmatprep.subr.bf16.mxu0 0
        %1598 = vmatpush1.bf16.msra.mxu0 0
        %1599 = vmatprep.subr.bf16.mxu0 0
        %1600 = vmatpush1.bf16.msra.mxu0 0
        %1601 = vmatprep.subr.bf16.mxu0 0
        %1602 = vmatpush1.bf16.msra.mxu0 0
        %1603 = vmatprep.subr.bf16.mxu0 0
        %1604 = vmatpush1.bf16.msra.mxu0 0
        %1605 = vmatprep.subr.bf16.mxu0 0
        %1606 = vmatpush1.bf16.msra.mxu0 0
        %1607 = vmatprep.subr.bf16.mxu0 0
        %1608 = vmatpush1.bf16.msra.mxu0 0
        %1609 = vmatprep.subr.bf16.mxu0 0
        %1610 = vmatpush1.bf16.msra.mxu0 0
        %1611 = vmatprep.subr.bf16.mxu0 0
        %1612 = vmatpush1.bf16.msra.mxu0 0
        %1613 = vmatprep.subr.bf16.mxu0 0
        %1614 = vmatpush1.bf16.msra.mxu0 0
        %1615 = vmatprep.mubr.bf16.mxu0 0
        %1616 = vmatmul.mubr.bf16.gmra.mrb[0].mxu0 %v1577
        %v1617 = vpop.f32.mrb[0].mxu0
        %v1618 = vadd.f32 0.0, %v1617
        %v1619 = vpop.f32.mrb[0].mxu0
        %v1620 = vpop.f32.mrb[0].mxu0
        %v1621 = vpop.f32.mrb[0].mxu0
        %1622 = vdwg.mxu0
        %v1624 = vsel %vm1335, %v1573, 0
        %v1627 = vsel %vm1579, %v1332, 0
        %1629 = vmatprep.subr.bf16.mxu0 0
        %1630 = vmatpush1.bf16.msra.mxu0 %v1627
        %1631 = vmatprep.subr.bf16.mxu0 0
        %1632 = vmatpush1.bf16.msra.mxu0 0
        %1633 = vmatprep.subr.bf16.mxu0 0
        %1634 = vmatpush1.bf16.msra.mxu0 0
        %1635 = vmatprep.subr.bf16.mxu0 0
        %1636 = vmatpush1.bf16.msra.mxu0 0
        %1637 = vmatprep.subr.bf16.mxu0 0
        %1638 = vmatpush1.bf16.msra.mxu0 0
        %1639 = vmatprep.subr.bf16.mxu0 0
        %1640 = vmatpush1.bf16.msra.mxu0 0
        %1641 = vmatprep.subr.bf16.mxu0 0
        %1642 = vmatpush1.bf16.msra.mxu0 0
        %1643 = vmatprep.subr.bf16.mxu0 0
        %1644 = vmatpush1.bf16.msra.mxu0 0
        %1645 = vmatprep.subr.bf16.mxu0 0
        %1646 = vmatpush1.bf16.msra.mxu0 0
        %1647 = vmatprep.subr.bf16.mxu0 0
        %1648 = vmatpush1.bf16.msra.mxu0 0
        %1649 = vmatprep.subr.bf16.mxu0 0
        %1650 = vmatpush1.bf16.msra.mxu0 0
        %1651 = vmatprep.subr.bf16.mxu0 0
        %1652 = vmatpush1.bf16.msra.mxu0 0
        %1653 = vmatprep.subr.bf16.mxu0 0
        %1654 = vmatpush1.bf16.msra.mxu0 0
        %1655 = vmatprep.subr.bf16.mxu0 0
        %1656 = vmatpush1.bf16.msra.mxu0 0
        %1657 = vmatprep.subr.bf16.mxu0 0
        %1658 = vmatpush1.bf16.msra.mxu0 0
        %1659 = vmatprep.subr.bf16.mxu0 0
        %1660 = vmatpush1.bf16.msra.mxu0 0
        %1661 = vmatprep.mubr.bf16.mxu0 0
        %1662 = vmatmul.mubr.bf16.gmra.mrb[0].mxu0 %v1624
        %v1663 = vpop.f32.mrb[0].mxu0
        %v1664 = vadd.f32 0.0, %v1663
        %v1665 = vpop.f32.mrb[0].mxu0
        %v1666 = vpop.f32.mrb[0].mxu0
        %v1667 = vpop.f32.mrb[0].mxu0
        %1668 = vdwg.mxu0
        %v1670 = vsel %vm1335, %v1574, 0
        %v1673 = vsel %vm1579, %v1333, 0
        %1675 = vmatprep.subr.bf16.mxu0 0
        %1676 = vmatpush1.bf16.msra.mxu0 %v1673
        %1677 = vmatprep.subr.bf16.mxu0 0
        %1678 = vmatpush1.bf16.msra.mxu0 0
        %1679 = vmatprep.subr.bf16.mxu0 0
        %1680 = vmatpush1.bf16.msra.mxu0 0
        %1681 = vmatprep.subr.bf16.mxu0 0
        %1682 = vmatpush1.bf16.msra.mxu0 0
        %1683 = vmatprep.subr.bf16.mxu0 0
        %1684 = vmatpush1.bf16.msra.mxu0 0
        %1685 = vmatprep.subr.bf16.mxu0 0
        %1686 = vmatpush1.bf16.msra.mxu0 0
        %1687 = vmatprep.subr.bf16.mxu0 0
        %1688 = vmatpush1.bf16.msra.mxu0 0
        %1689 = vmatprep.subr.bf16.mxu0 0
        %1690 = vmatpush1.bf16.msra.mxu0 0
        %1691 = vmatprep.subr.bf16.mxu0 0
        %1692 = vmatpush1.bf16.msra.mxu0 0
        %1693 = vmatprep.subr.bf16.mxu0 0
        %1694 = vmatpush1.bf16.msra.mxu0 0
        %1695 = vmatprep.subr.bf16.mxu0 0
        %1696 = vmatpush1.bf16.msra.mxu0 0
        %1697 = vmatprep.subr.bf16.mxu0 0
        %1698 = vmatpush1.bf16.msra.mxu0 0
        %1699 = vmatprep.subr.bf16.mxu0 0
        %1700 = vmatpush1.bf16.msra.mxu0 0
        %1701 = vmatprep.subr.bf16.mxu0 0
        %1702 = vmatpush1.bf16.msra.mxu0 0
        %1703 = vmatprep.subr.bf16.mxu0 0
        %1704 = vmatpush1.bf16.msra.mxu0 0
        %1705 = vmatprep.subr.bf16.mxu0 0
        %1706 = vmatpush1.bf16.msra.mxu0 0
        %1707 = vmatprep.mubr.bf16.mxu0 0
        %1708 = vmatmul.mubr.bf16.gmra.mrb[0].mxu0 %v1670
        %v1709 = vpop.f32.mrb[0].mxu0
        %v1710 = vadd.f32 0.0, %v1709
        %v1711 = vpop.f32.mrb[0].mxu0
        %v1712 = vpop.f32.mrb[0].mxu0
        %v1713 = vpop.f32.mrb[0].mxu0
        %1714 = vdwg.mxu0
        %v1716 = vsel %vm1335, %v1575, 0
        %v1719 = vsel %vm1579, %v1334, 0
        %1721 = vmatprep.subr.bf16.mxu0 0
        %1722 = vmatpush1.bf16.msra.mxu0 %v1719
        %1723 = vmatprep.subr.bf16.mxu0 0
        %1724 = vmatpush1.bf16.msra.mxu0 0
        %1725 = vmatprep.subr.bf16.mxu0 0
        %1726 = vmatpush1.bf16.msra.mxu0 0
        %1727 = vmatprep.subr.bf16.mxu0 0
        %1728 = vmatpush1.bf16.msra.mxu0 0
        %1729 = vmatprep.subr.bf16.mxu0 0
        %1730 = vmatpush1.bf16.msra.mxu0 0
        %1731 = vmatprep.subr.bf16.mxu0 0
        %1732 = vmatpush1.bf16.msra.mxu0 0
        %1733 = vmatprep.subr.bf16.mxu0 0
        %1734 = vmatpush1.bf16.msra.mxu0 0
        %1735 = vmatprep.subr.bf16.mxu0 0
        %1736 = vmatpush1.bf16.msra.mxu0 0
        %1737 = vmatprep.subr.bf16.mxu0 0
        %1738 = vmatpush1.bf16.msra.mxu0 0
        %1739 = vmatprep.subr.bf16.mxu0 0
        %1740 = vmatpush1.bf16.msra.mxu0 0
        %1741 = vmatprep.subr.bf16.mxu0 0
        %1742 = vmatpush1.bf16.msra.mxu0 0
        %1743 = vmatprep.subr.bf16.mxu0 0
        %1744 = vmatpush1.bf16.msra.mxu0 0
        %1745 = vmatprep.subr.bf16.mxu0 0
        %1746 = vmatpush1.bf16.msra.mxu0 0
        %1747 = vmatprep.subr.bf16.mxu0 0
        %1748 = vmatpush1.bf16.msra.mxu0 0
        %1749 = vmatprep.subr.bf16.mxu0 0
        %1750 = vmatpush1.bf16.msra.mxu0 0
        %1751 = vmatprep.subr.bf16.mxu0 0
        %1752 = vmatpush1.bf16.msra.mxu0 0
        %1753 = vmatprep.mubr.bf16.mxu0 0
        %1754 = vmatmul.mubr.bf16.gmra.mrb[0].mxu0 %v1716
        %v1755 = vpop.f32.mrb[0].mxu0
        %v1756 = vadd.f32 0.0, %v1755
        %v1757 = vpop.f32.mrb[0].mxu0
        %v1758 = vpop.f32.mrb[0].mxu0
        %v1759 = vpop.f32.mrb[0].mxu0
        %1760 = vdwg.mxu0
        %v1761 = vcombine.low %v1618, %v1710
        %v1762 = vcombine.high %v1618, %v1710
        %v1764 = vunpack.c.l.s4 1983009808
        %v1765 = vunpack.c.0.s8 %v1764
        %v1766 = vlaneseq
        %v1767 = vshrl.u32 %v1766, 7
        %v1768 = vsub.s32 %v1765, %v1767
        %v1769 = vrot.slane %v1761, %v1768
        %v1771 = vunpack.c.l.s4 1983009808
        %v1772 = vunpack.c.0.s8 %v1771
        %v1773 = vlaneseq
        %v1774 = vshrl.u32 %v1773, 7
        %v1775 = vsub.s32 %v1772, %v1774
        %v1776 = vrot.slane %v1762, %v1775
        %v1777 = vcombine.low %v1664, %v1756
        %v1778 = vcombine.high %v1664, %v1756
        %v1780 = vunpack.c.l.s4 1983009808
        %v1781 = vunpack.c.0.s8 %v1780
        %v1782 = vlaneseq
        %v1783 = vshrl.u32 %v1782, 7
        %v1784 = vsub.s32 %v1781, %v1783
        %v1785 = vrot.slane %v1777, %v1784
        %v1787 = vunpack.c.l.s4 1983009808
        %v1788 = vunpack.c.0.s8 %v1787
        %v1789 = vlaneseq
        %v1790 = vshrl.u32 %v1789, 7
        %v1791 = vsub.s32 %v1788, %v1790
        %v1792 = vrot.slane %v1778, %v1791
        %v1793 = vcombine.low %v1769, %v1785
        %v1794 = vcombine.high %v1769, %v1785
        %v1796 = vunpack.c.l.s4 1934713408
        %v1797 = vunpack.c.0.s8 %v1796
        %v1798 = vlaneseq
        %v1799 = vshrl.u32 %v1798, 7
        %v1800 = vsub.s32 %v1797, %v1799
        %v1801 = vrot.slane %v1793, %v1800
        %v1803 = vunpack.c.l.s4 1934713408
        %v1804 = vunpack.c.0.s8 %v1803
        %v1805 = vlaneseq
        %v1806 = vshrl.u32 %v1805, 7
        %v1807 = vsub.s32 %v1804, %v1806
        %v1808 = vrot.slane %v1794, %v1807
        %v1809 = vcombine.low %v1776, %v1792
        %v1810 = vcombine.high %v1776, %v1792
        %v1812 = vunpack.c.l.s4 1934713408
        %v1813 = vunpack.c.0.s8 %v1812
        %v1814 = vlaneseq
        %v1815 = vshrl.u32 %v1814, 7
        %v1816 = vsub.s32 %v1813, %v1815
        %v1817 = vrot.slane %v1809, %v1816
        %v1819 = vunpack.c.l.s4 1934713408
        %v1820 = vunpack.c.0.s8 %v1819
        %v1821 = vlaneseq
        %v1822 = vshrl.u32 %v1821, 7
        %v1823 = vsub.s32 %v1820, %v1822
        %v1824 = vrot.slane %v1810, %v1823
        %v1825 = vcombine.high %v1801, 0.0
        %v1826 = vcombine.high %v1808, 0.0
        %v1827 = vcombine.high %v1817, 0.0
        %v1828 = vcombine.high %v1824, 0.0
        %v1829 = vcombine.low %v1801, %v1808
        %v1831 = vunpack.c.l.s4 1983009808
        %v1832 = vunpack.c.0.s8 %v1831
        %v1833 = vlaneseq
        %v1834 = vshrl.u32 %v1833, 7
        %v1835 = vsub.s32 %v1832, %v1834
        %v1836 = vrot.slane %v1829, %v1835
        %v1837 = vcombine.low %v1825, %v1826
        %v1839 = vunpack.c.l.s4 1983009808
        %v1840 = vunpack.c.0.s8 %v1839
        %v1841 = vlaneseq
        %v1842 = vshrl.u32 %v1841, 7
        %v1843 = vsub.s32 %v1840, %v1842
        %v1844 = vrot.slane %v1837, %v1843
        %v1845 = vcombine.low %v1817, %v1824
        %v1847 = vunpack.c.l.s4 1983009808
        %v1848 = vunpack.c.0.s8 %v1847
        %v1849 = vlaneseq
        %v1850 = vshrl.u32 %v1849, 7
        %v1851 = vsub.s32 %v1848, %v1850
        %v1852 = vrot.slane %v1845, %v1851
        %v1853 = vcombine.low %v1827, %v1828
        %v1855 = vunpack.c.l.s4 1983009808
        %v1856 = vunpack.c.0.s8 %v1855
        %v1857 = vlaneseq
        %v1858 = vshrl.u32 %v1857, 7
        %v1859 = vsub.s32 %v1856, %v1858
        %v1860 = vrot.slane %v1853, %v1859
        %v1861 = vcombine.low %v1836, %v1844
        %v1862 = vcombine.high %v1836, %v1844
        %v1864 = vunpack.c.l.s4 1934713408
        %v1865 = vunpack.c.0.s8 %v1864
        %v1866 = vlaneseq
        %v1867 = vshrl.u32 %v1866, 7
        %v1868 = vsub.s32 %v1865, %v1867
        %v1869 = vrot.slane %v1861, %v1868
        %v1871 = vunpack.c.l.s4 1934713408
        %v1872 = vunpack.c.0.s8 %v1871
        %v1873 = vlaneseq
        %v1874 = vshrl.u32 %v1873, 7
        %v1875 = vsub.s32 %v1872, %v1874
        %v1876 = vrot.slane %v1862, %v1875
        %v1877 = vcombine.low %v1852, %v1860
        %v1878 = vcombine.high %v1852, %v1860
        %v1880 = vunpack.c.l.s4 1934713408
        %v1881 = vunpack.c.0.s8 %v1880
        %v1882 = vlaneseq
        %v1883 = vshrl.u32 %v1882, 7
        %v1884 = vsub.s32 %v1881, %v1883
        %v1885 = vrot.slane %v1877, %v1884
        %v1887 = vunpack.c.l.s4 1934713408
        %v1888 = vunpack.c.0.s8 %v1887
        %v1889 = vlaneseq
        %v1890 = vshrl.u32 %v1889, 7
        %v1891 = vsub.s32 %v1888, %v1890
        %v1892 = vrot.slane %v1878, %v1891
        %v1893 = vcombine.low %v1869, %v1885
        %v1894 = vcombine.high %v1869, %v1885
        %v1895 = vcombine.low %v1876, %v1892
        %v1896 = vcombine.high %v1876, %v1892
        %1898 = vrot.lane.b32.xlu0 %v1894, 8
        %v1899 = vpop.permute.xlu0 %1898
        %1902 = vrot.lane.b32.xlu0 %v1895, 16
        %v1903 = vpop.permute.xlu0 %1902
        %1906 = vrot.lane.b32.xlu0 %v1896, 24
        %v1907 = vpop.permute.xlu0 %1906
        %v1909 = vsel %vm1335, %v1893, %v1899
        %vm1910 = vcmask 130048
        %v1911 = vsel %vm1910, %v1909, %v1903
        %vm1912 = vcmask 195584
        %v1913 = vsel %vm1912, %v1911, %v1907
        %v1914 = vpack.c.bf16 %v1913, %v1913
        %s1915 = smul.addr %s810, 4
        %s1916 = scalar_lea.vmem %s7, %s1915
        %v1917 = vld [vmem:[%s1916] sm:$0xf]
        %v1918 = vld [vmem:[%s1916 + $0x4] sm:$0xf]
        %v1919 = vld [vmem:[%s1916 + $0x8] sm:$0xf]
        %v1920 = vld [vmem:[%s1916 + $0xc] sm:$0xf]
        %s1921 = scalar_lea.vmem [#allocation14], %s52
        %v1922 = vld [vmem:[%s1921] sm:$0x1]
        %v1924 = vlaneseq
        %v1925 = vshrl.u32 %v1924, 7
        %v1926 = vsub.s32 0, %v1925
        %v1927 = vrot.slane %v1922, %v1926
        %v1933 = vunpack.c.l.b16 %v1917
        %v1934 = vunpack.c.l.b16 %v1918
        %v1935 = vunpack.c.l.b16 %v1919
        %v1936 = vunpack.c.l.b16 %v1920
        %v1937 = vpack.c.b16 %v1934, %v1933
        %v1938 = vpack.c.b16 %v1936, %v1935
        %v1942 = vsel %vm837, %v1914, 0
        %1944 = vmatprep.subr.bf16.mxu0 0
        %1945 = vmatpush1.bf16.msra.mxu0 %v1937
        %1946 = vmatprep.subr.bf16.mxu0 0
        %1947 = vmatpush1.bf16.msra.mxu0 %v1938
        %1948 = vmatprep.subr.bf16.mxu0 0
        %1949 = vmatpush1.bf16.msra.mxu0 0
        %1950 = vmatprep.subr.bf16.mxu0 0
        %1951 = vmatpush1.bf16.msra.mxu0 0
        %1952 = vmatprep.subr.bf16.mxu0 0
        %1953 = vmatpush1.bf16.msra.mxu0 0
        %1954 = vmatprep.subr.bf16.mxu0 0
        %1955 = vmatpush1.bf16.msra.mxu0 0
        %1956 = vmatprep.subr.bf16.mxu0 0
        %1957 = vmatpush1.bf16.msra.mxu0 0
        %1958 = vmatprep.subr.bf16.mxu0 0
        %1959 = vmatpush1.bf16.msra.mxu0 0
        %1960 = vmatprep.subr.bf16.mxu0 0
        %1961 = vmatpush1.bf16.msra.mxu0 0
        %1962 = vmatprep.subr.bf16.mxu0 0
        %1963 = vmatpush1.bf16.msra.mxu0 0
        %1964 = vmatprep.subr.bf16.mxu0 0
        %1965 = vmatpush1.bf16.msra.mxu0 0
        %1966 = vmatprep.subr.bf16.mxu0 0
        %1967 = vmatpush1.bf16.msra.mxu0 0
        %1968 = vmatprep.subr.bf16.mxu0 0
        %1969 = vmatpush1.bf16.msra.mxu0 0
        %1970 = vmatprep.subr.bf16.mxu0 0
        %1971 = vmatpush1.bf16.msra.mxu0 0
        %1972 = vmatprep.subr.bf16.mxu0 0
        %1973 = vmatpush1.bf16.msra.mxu0 0
        %1974 = vmatprep.subr.bf16.mxu0 0
        %1975 = vmatpush1.bf16.msra.mxu0 0
        %1976 = vmatprep.mubr.bf16.mxu0 0
        %1977 = vmatmul.mubr.bf16.gmra.mrb[0].mxu0 %v1942
        %v1978 = vpop.f32.mrb[0].mxu0
        %v1979 = vadd.f32 %v1927, %v1978
        %v1980 = vpop.f32.mrb[0].mxu0
        %v1981 = vpop.f32.mrb[0].mxu0
        %v1982 = vpop.f32.mrb[0].mxu0
        %1983 = vdwg.mxu0
        %v1984 = vadd.f32 %v807, %v1979
        %s1985 = scalar_lea.vmem [#allocation15], %s52
        %v1986 = vld [vmem:[%s1985] sm:$0x1]
        %s1987 = scalar_lea.vmem [#allocation17], %s52
        %v1988 = vld [vmem:[%s1987] sm:$0x1]
        %v1989 = vsel %vm837, %v1984, 0.0
        %1990 = vadd.xlane.f32.xlu0 %v1989
        %v1991 = vpop.xlane.xlu0 %1990
        %v1992 = vrcp.pop 32.0
        %v1993 = vmul.f32 %v1991, %v1992
        %v1994 = vsub.f32 %v1984, %v1993
        %v1995 = vmul.f32 %v1994, %v1994
        %v1996 = vsel %vm837, %v1995, 0.0
        %1997 = vadd.xlane.f32.xlu0 %v1996
        %v1998 = vpop.xlane.xlu0 %1997
        %v1999 = vmul.f32 %v1998, %v1992
        %v2000 = vadd.f32 %v1999, 1e-05
        %v2001 = vrsqrt.pop %v2000
        %v2002 = vmul.f32 %v1994, %v2001
        %v2004 = vlaneseq
        %v2005 = vshrl.u32 %v2004, 7
        %v2006 = vsub.s32 0, %v2005
        %v2007 = vrot.slane %v1986, %v2006
        %v2009 = vmul.f32 %v2002, %v2007
        %v2011 = vlaneseq
        %v2012 = vshrl.u32 %v2011, 7
        %v2013 = vsub.s32 0, %v2012
        %v2014 = vrot.slane %v1988, %v2013
        %v2016 = vadd.f32 %v2009, %v2014
        %v2017 = vpack.c.bf16 %v2016, %v2016
        %s2018 = smul.addr %s810, 4
        %s2019 = scalar_lea.vmem %s11, %s2018
        %v2020 = vld [vmem:[%s2019] sm:$0xf]
        %v2021 = vld [vmem:[%s2019 + $0x4] sm:$0xf]
        %v2022 = vld [vmem:[%s2019 + $0x8] sm:$0xf]
        %v2023 = vld [vmem:[%s2019 + $0xc] sm:$0xf]
        %s2024 = scalar_lea.vmem [#allocation18], %s52
        %v2025 = vld [vmem:[%s2024] sm:$0x1]
        %v2027 = vlaneseq
        %v2028 = vshrl.u32 %v2027, 7
        %v2029 = vsub.s32 0, %v2028
        %v2030 = vrot.slane %v2025, %v2029
        %v2036 = vunpack.c.l.b16 %v2020
        %v2037 = vunpack.c.l.b16 %v2021
        %v2038 = vunpack.c.l.b16 %v2022
        %v2039 = vunpack.c.l.b16 %v2023
        %v2040 = vpack.c.b16 %v2037, %v2036
        %v2041 = vpack.c.b16 %v2039, %v2038
        %v2045 = vsel %vm837, %v2017, 0
        %2047 = vmatprep.subr.bf16.mxu0 0
        %2048 = vmatpush1.bf16.msra.mxu0 %v2040
        %2049 = vmatprep.subr.bf16.mxu0 0
        %2050 = vmatpush1.bf16.msra.mxu0 %v2041
        %2051 = vmatprep.subr.bf16.mxu0 0
        %2052 = vmatpush1.bf16.msra.mxu0 0
        %2053 = vmatprep.subr.bf16.mxu0 0
        %2054 = vmatpush1.bf16.msra.mxu0 0
        %2055 = vmatprep.subr.bf16.mxu0 0
        %2056 = vmatpush1.bf16.msra.mxu0 0
        %2057 = vmatprep.subr.bf16.mxu0 0
        %2058 = vmatpush1.bf16.msra.mxu0 0
        %2059 = vmatprep.subr.bf16.mxu0 0
        %2060 = vmatpush1.bf16.msra.mxu0 0
        %2061 = vmatprep.subr.bf16.mxu0 0
        %2062 = vmatpush1.bf16.msra.mxu0 0
        %2063 = vmatprep.subr.bf16.mxu0 0
        %2064 = vmatpush1.bf16.msra.mxu0 0
        %2065 = vmatprep.subr.bf16.mxu0 0
        %2066 = vmatpush1.bf16.msra.mxu0 0
        %2067 = vmatprep.subr.bf16.mxu0 0
        %2068 = vmatpush1.bf16.msra.mxu0 0
        %2069 = vmatprep.subr.bf16.mxu0 0
        %2070 = vmatpush1.bf16.msra.mxu0 0
        %2071 = vmatprep.subr.bf16.mxu0 0
        %2072 = vmatpush1.bf16.msra.mxu0 0
        %2073 = vmatprep.subr.bf16.mxu0 0
        %2074 = vmatpush1.bf16.msra.mxu0 0
        %2075 = vmatprep.subr.bf16.mxu0 0
        %2076 = vmatpush1.bf16.msra.mxu0 0
        %2077 = vmatprep.subr.bf16.mxu0 0
        %2078 = vmatpush1.bf16.msra.mxu0 0
        %2079 = vmatprep.mubr.bf16.mxu0 0
        %2080 = vmatmul.mubr.bf16.gmra.mrb[0].mxu0 %v2045
        %v2081 = vpop.f32.mrb[0].mxu0
        %v2082 = vadd.f32 %v2030, %v2081
        %v2083 = vpop.f32.mrb[0].mxu0
        %v2084 = vpop.f32.mrb[0].mxu0
        %v2085 = vpop.f32.mrb[0].mxu0
        %2086 = vdwg.mxu0
        %v2087 = vmax.f32 %v2082, 0.0
        %v2088 = vpack.c.bf16 %v2087, %v2087
        %s2089 = smul.u32 %s52, 8
        %s2090 = smul.addr %s2089, 4
        %s2091 = scalar_lea.vmem %s13, %s2090
        %v2092 = vld [vmem:[%s2091] sm:$0xf]
        %v2093 = vld [vmem:[%s2091 + $0x4] sm:$0xf]
        %v2094 = vld [vmem:[%s2091 + $0x8] sm:$0xf]
        %v2095 = vld [vmem:[%s2091 + $0xc] sm:$0xf]
        %v2096 = vld [vmem:[%s2091 + $0x10] sm:$0xf]
        %v2097 = vld [vmem:[%s2091 + $0x14] sm:$0xf]
        %v2098 = vld [vmem:[%s2091 + $0x18] sm:$0xf]
        %v2099 = vld [vmem:[%s2091 + $0x1c] sm:$0xf]
        %s2100 = scalar_lea.vmem %s14, %s52
        %v2101 = vld [vmem:[%s2100] sm:$0x1]
        %v2103 = vlaneseq
        %v2104 = vshrl.u32 %v2103, 7
        %v2105 = vsub.s32 0, %v2104
        %v2106 = vrot.slane %v2101, %v2105
        %v2116 = vunpack.c.l.b16 %v2092
        %v2117 = vunpack.c.l.b16 %v2093
        %v2118 = vunpack.c.l.b16 %v2094
        %v2119 = vunpack.c.l.b16 %v2095
        %v2120 = vunpack.c.l.b16 %v2096
        %v2121 = vunpack.c.l.b16 %v2097
        %v2122 = vunpack.c.l.b16 %v2098
        %v2123 = vunpack.c.l.b16 %v2099
        %v2124 = vpack.c.b16 %v2117, %v2116
        %v2125 = vpack.c.b16 %v2119, %v2118
        %v2126 = vpack.c.b16 %v2121, %v2120
        %v2127 = vpack.c.b16 %v2123, %v2122
        %vm2132 = vcmask 523264
        %v2134 = vsel %vm2132, %v2088, 0
        %2136 = vmatprep.subr.bf16.mxu0 0
        %2137 = vmatpush1.bf16.msra.mxu0 %v2124
        %2138 = vmatprep.subr.bf16.mxu0 0
        %2139 = vmatpush1.bf16.msra.mxu0 %v2125
        %2140 = vmatprep.subr.bf16.mxu0 0
        %2141 = vmatpush1.bf16.msra.mxu0 %v2126
        %2142 = vmatprep.subr.bf16.mxu0 0
        %2143 = vmatpush1.bf16.msra.mxu0 %v2127
        %2144 = vmatprep.subr.bf16.mxu0 0
        %2145 = vmatpush1.bf16.msra.mxu0 0
        %2146 = vmatprep.subr.bf16.mxu0 0
        %2147 = vmatpush1.bf16.msra.mxu0 0
        %2148 = vmatprep.subr.bf16.mxu0 0
        %2149 = vmatpush1.bf16.msra.mxu0 0
        %2150 = vmatprep.subr.bf16.mxu0 0
        %2151 = vmatpush1.bf16.msra.mxu0 0
        %2152 = vmatprep.subr.bf16.mxu0 0
        %2153 = vmatpush1.bf16.msra.mxu0 0
        %2154 = vmatprep.subr.bf16.mxu0 0
        %2155 = vmatpush1.bf16.msra.mxu0 0
        %2156 = vmatprep.subr.bf16.mxu0 0
        %2157 = vmatpush1.bf16.msra.mxu0 0
        %2158 = vmatprep.subr.bf16.mxu0 0
        %2159 = vmatpush1.bf16.msra.mxu0 0
        %2160 = vmatprep.subr.bf16.mxu0 0
        %2161 = vmatpush1.bf16.msra.mxu0 0
        %2162 = vmatprep.subr.bf16.mxu0 0
        %2163 = vmatpush1.bf16.msra.mxu0 0
        %2164 = vmatprep.subr.bf16.mxu0 0
        %2165 = vmatpush1.bf16.msra.mxu0 0
        %2166 = vmatprep.subr.bf16.mxu0 0
        %2167 = vmatpush1.bf16.msra.mxu0 0
        %2168 = vmatprep.mubr.bf16.mxu0 0
        %2169 = vmatmul.mubr.bf16.gmra.mrb[0].mxu0 %v2134
        %v2170 = vpop.f32.mrb[0].mxu0
        %v2171 = vadd.f32 %v2106, %v2170
        %v2172 = vpop.f32.mrb[0].mxu0
        %v2173 = vpop.f32.mrb[0].mxu0
        %v2174 = vpop.f32.mrb[0].mxu0
        %2175 = vdwg.mxu0
        %v2176 = vadd.f32 %v2016, %v2171
        %s2177 = scalar_lea.vmem %s15, %s52
        %v2178 = vld [vmem:[%s2177] sm:$0x1]
        %s2179 = scalar_lea.vmem %s16, %s52
        %v2180 = vld [vmem:[%s2179] sm:$0x1]
        %v2181 = vsel %vm837, %v2176, 0.0
        %2182 = vadd.xlane.f32.xlu0 %v2181
        %v2183 = vpop.xlane.xlu0 %2182
        %v2184 = vmul.f32 %v2183, %v1992
        %v2185 = vsub.f32 %v2176, %v2184
        %v2186 = vmul.f32 %v2185, %v2185
        %v2187 = vsel %vm837, %v2186, 0.0
        %2188 = vadd.xlane.f32.xlu0 %v2187
        %v2189 = vpop.xlane.xlu0 %2188
        %v2190 = vmul.f32 %v2189, %v1992
        %v2191 = vadd.f32 %v2190, 1e-05
        %v2192 = vrsqrt.pop %v2191
        %v2193 = vmul.f32 %v2185, %v2192
        %v2195 = vlaneseq
        %v2196 = vshrl.u32 %v2195, 7
        %v2197 = vsub.s32 0, %v2196
        %v2198 = vrot.slane %v2178, %v2197
        %v2200 = vmul.f32 %v2193, %v2198
        %v2202 = vlaneseq
        %v2203 = vshrl.u32 %v2202, 7
        %v2204 = vsub.s32 0, %v2203
        %v2205 = vrot.slane %v2180, %v2204
        %v2207 = vadd.f32 %v2200, %v2205
        %2208 = vst.msk [vmem:[#allocation2] sm:$0xff] %vm837, %v2207
        %p2209 = scmp.eq.s32.totalorder %s52, 1
        // Predicated region
        $region133: #{tpu_custom_call.1} parent=95 // pred_check
          %p2210 = pneg %p2209
        $region134: #{tpu_custom_call.1} parent=95 // pred_check_branch
          %2212 = sbr.rel (%p2210) target = $region136
        $region135: #{tpu_custom_call.1} parent=95 // pred_region
          %v2213 = vlaneseq
          %v2214 = vshrl.u32 %v2213, 7
          %s2215 = sld [smem:[#allocation5 + %s51]]
          %v2216 = vstv %s2215
          %vm2217 = vcmp.eq.s32.totalorder %v2214, %v2216
          %v2218 = vsel %vm2217, 1, 0
          %v2219 = vcvt.s32.f32 %v2218
          %v2220 = vmul.f32 %v2207, %v2219
          %v2221 = vsel %vm837, %v2220, 0.0
          %v2222 = vrot.slane %v2221, 4
          %v2223 = vadd.f32 %v2221, %v2222
          %v2224 = vrot.slane %v2223, 2
          %v2225 = vadd.f32 %v2223, %v2224
          %v2226 = vrot.slane %v2225, 1
          %v2227 = vadd.f32 %v2225, %v2226
          %v2228 = vld [vmem:[%s17] sm:$0x1]
          %v2229 = vld [vmem:[%s18] sm:$0x1]
          %v2230 = vsel %vm837, %v2227, 0.0
          %2231 = vadd.xlane.f32.xlu0 %v2230
          %v2232 = vpop.xlane.xlu0 %2231
          %v2233 = vmul.f32 %v2232, %v1992
          %v2234 = vsub.f32 %v2227, %v2233
          %v2235 = vmul.f32 %v2234, %v2234
          %v2236 = vsel %vm837, %v2235, 0.0
          %2237 = vadd.xlane.f32.xlu0 %v2236
          %v2238 = vpop.xlane.xlu0 %2237
          %v2239 = vmul.f32 %v2238, %v1992
          %v2240 = vadd.f32 %v2239, 1e-05
          %v2241 = vrsqrt.pop %v2240
          %v2242 = vmul.f32 %v2234, %v2241
          %v2243 = vmul.f32 %v2242, %v2228
          %v2244 = vadd.f32 %v2243, %v2229
          %v2245 = vpack.c.bf16 %v2244, %v2244
          %v2246 = vld [vmem:[%s19] sm:$0xf]
          %v2247 = vld [vmem:[%s19 + $0x4] sm:$0xf]
          %v2248 = vld [vmem:[%s19 + $0x8] sm:$0xf]
          %v2249 = vld [vmem:[%s19 + $0xc] sm:$0xf]
          %v2254 = vunpack.c.l.b16 %v2246
          %v2255 = vunpack.c.l.b16 %v2247
          %v2256 = vunpack.c.l.b16 %v2248
          %v2257 = vunpack.c.l.b16 %v2249
          %v2258 = vpack.c.b16 %v2255, %v2254
          %v2259 = vpack.c.b16 %v2257, %v2256
          %v2263 = vsel %vm837, %v2245, 0
          %2265 = vmatprep.subr.bf16.mxu0 0
          %2266 = vmatpush1.bf16.msra.mxu0 %v2258
          %2267 = vmatprep.subr.bf16.mxu0 0
          %2268 = vmatpush1.bf16.msra.mxu0 %v2259
          %2269 = vmatprep.subr.bf16.mxu0 0
          %2270 = vmatpush1.bf16.msra.mxu0 0
          %2271 = vmatprep.subr.bf16.mxu0 0
          %2272 = vmatpush1.bf16.msra.mxu0 0
          %2273 = vmatprep.subr.bf16.mxu0 0
          %2274 = vmatpush1.bf16.msra.mxu0 0
          %2275 = vmatprep.subr.bf16.mxu0 0
          %2276 = vmatpush1.bf16.msra.mxu0 0
          %2277 = vmatprep.subr.bf16.mxu0 0
          %2278 = vmatpush1.bf16.msra.mxu0 0
          %2279 = vmatprep.subr.bf16.mxu0 0
          %2280 = vmatpush1.bf16.msra.mxu0 0
          %2281 = vmatprep.subr.bf16.mxu0 0
          %2282 = vmatpush1.bf16.msra.mxu0 0
          %2283 = vmatprep.subr.bf16.mxu0 0
          %2284 = vmatpush1.bf16.msra.mxu0 0
          %2285 = vmatprep.subr.bf16.mxu0 0
          %2286 = vmatpush1.bf16.msra.mxu0 0
          %2287 = vmatprep.subr.bf16.mxu0 0
          %2288 = vmatpush1.bf16.msra.mxu0 0
          %2289 = vmatprep.subr.bf16.mxu0 0
          %2290 = vmatpush1.bf16.msra.mxu0 0
          %2291 = vmatprep.subr.bf16.mxu0 0
          %2292 = vmatpush1.bf16.msra.mxu0 0
          %2293 = vmatprep.subr.bf16.mxu0 0
          %2294 = vmatpush1.bf16.msra.mxu0 0
          %2295 = vmatprep.subr.bf16.mxu0 0
          %2296 = vmatpush1.bf16.msra.mxu0 0
          %2297 = vmatprep.mubr.bf16.mxu0 0
          %2298 = vmatmul.mubr.bf16.gmra.mrb[0].mxu0 %v2263
          %v2299 = vpop.f32.mrb[0].mxu0
          %v2300 = vadd.f32 0.0, %v2299
          %v2301 = vpop.f32.mrb[0].mxu0
          %v2302 = vpop.f32.mrb[0].mxu0
          %v2303 = vpop.f32.mrb[0].mxu0
          %2304 = vdwg.mxu0
          %2305 = vst [vmem:[%s752] sm:$0x1] %v2300
        $region136: #{tpu_custom_call.1} parent=95 // pred_fallthru
          _
        %s2306 = sand.u32 %s476, 1
        %s2307 = scalar_lea.sflag [#allocation8], %s2306
        %s2308 = sand.u32 %s476, 1
        %s2309 = scalar_lea.vmem [#allocation20], %s2308
        // Predicated region
        $region137: #{tpu_custom_call.1} parent=95 // pred_check
          %p2310 = pneg %p486
        $region138: #{tpu_custom_call.1} parent=95 // pred_check_branch
          %2312 = sbr.rel (%p2310) target = $region140
        $region139: #{tpu_custom_call.1} parent=95 // pred_region
          %s2314 = ssub.s32 16, 16
          %2315 = vsyncadd %s2307, %s2314
          %s2316 = smul.addr %s51, 16
          %s2317 = scalar_lea.hbm %s20, %s2316
          %s2319 = sshll.u32 %s2309, 4
          %s2320 = int_to_ptr.vmem [resolvable:$true] %s2319
          %2322 = dma.vmem_to_hbm [thread:$0]  %s2320, 16, %s2317, %s2307
        $region140: #{tpu_custom_call.1} parent=95 // pred_fallthru
          _
      $region96: #{tpu_custom_call.1} parent=5 // pred_fallthru
        _
      %p2323 = scmp.le.s32.totalorder 2, %s42
      // Predicated region
      $region141: #{tpu_custom_call.1} parent=5 // pred_check
        %p2324 = pneg %p2323
      $region142: #{tpu_custom_call.1} parent=5 // pred_check_branch
        %2326 = sbr.rel (%p2324) target = $region144
      $region143: #{tpu_custom_call.1} parent=5 // pred_region
        %s2327 = ssub.s32 %s42, 2
        // Predicated region
        $region145: #{tpu_custom_call.1} parent=143 // pred_check
          %p2328 = pneg %p492
        $region146: #{tpu_custom_call.1} parent=143 // pred_check_branch
          %2330 = sbr.rel (%p2328) target = $region148
        $region147: #{tpu_custom_call.1} parent=143 // pred_region
          %s2331 = sand.u32 %s477, 1
          %s2332 = scalar_lea.sflag [#allocation8], %s2331
          %s2333 = sand.u32 %s477, 1
          %s2334 = scalar_lea.vmem [#allocation20], %s2333
          %2335 = dma.done %s2332, 16
        $region148: #{tpu_custom_call.1} parent=143 // pred_fallthru
          _
      $region144: #{tpu_custom_call.1} parent=5 // pred_fallthru
        _
    $region6: #{tpu_custom_call.1} parent=1 // loop_footer
      %s46 = sadd.s32 1, %s42
    $region7: #{tpu_custom_call.1} parent=1 // loop_footer_branch
      %41 = sbr.rel target = $region3
    $region8: #{tpu_custom_call.1} parent=1 // loop_exit
      _
    %2336 = vsyncpa [#allocation7], 1
    %s2337 = scalar_lea.sflag [#allocation7], 1
    %2338 = vsyncpa %s2337, 1
    %2339 = vsyncpa [#allocation10], 1
    %s2340 = scalar_lea.sflag [#allocation10], 1
    %2341 = vsyncpa %s2340, 1
    %2342 = vsyncpa [#allocation13], 1
    %2343 = vsyncpa [#allocation16], 1
    %2344 = vsyncpa [#allocation19], 1
    %2345 = vsyncpa [#allocation8], 1
    %s2346 = scalar_lea.sflag [#allocation8], 1
    %2347 = vsyncpa %s2346, 1

</llo_original>
